<compile_context>
chip_gen: v5e
topology: v5e:2x2
jax: 0.10.0
libtpu: 0.0.40
codegen_flags: <defaults>
</compile_context>

<pallas_src>
import functools

import jax
import jax.numpy as jnp
from jax.experimental import pallas as pl
from jax.experimental.pallas import tpu as pltpu


def _round_up(a, m):
    return ((a + m - 1) // m) * m


def _kernel(x_ref, wq_ref, wkv_ref, wf_ref, b_ref, out_ref, kv_scr,
            *, heads, w, approx):
    """One grid step == (batch element b, query tile qi).

    x_ref    : (1, C_in, N_pad)       input, full (padded) sequence, resident
    wq_ref   : (hw, C_in)             head-stacked Q weights, BN scale folded
    wkv_ref  : (2*hw, C_in)           head-stacked K and V weights, BN folded
    wf_ref   : (C_out, hw)            fusion weights, BN scale folded
    b_ref    : (3*hw + C_out, 1)      f32 bias column: [bq; bk; bv; bf]
    out_ref  : (1, C_out, tq)         output tile (PyTorch NCL layout)
    kv_scr   : (2*hw, N)              VMEM scratch; K/V resident across q tiles
    (hw = heads * w, w already padded to the sublane packing)
    """
    hw = heads * w
    cdt = x_ref.dtype
    qi = pl.program_id(1)
    n_keys = kv_scr.shape[1]          # real sequence length N
    n_pad = x_ref.shape[2]            # padded length (multiple of tq)
    tq = out_ref.shape[2]

    # ---- K/V projection: once per batch element, resident in VMEM ----------
    @pl.when(qi == 0)
    def _():
        kv = jnp.dot(wkv_ref[...], x_ref[0],
                     preferred_element_type=jnp.float32)          # (2hw, N_pad)
        if n_pad != n_keys:
            kv = kv[:, :n_keys]       # drop zero-padded key columns
        kv = jnp.maximum(kv + b_ref[hw:3 * hw, :], 0.0)           # BN shift+ReLU
        kv_scr[...] = kv.astype(cdt)

    # ---- Q projection for this query tile (sliced from the resident block) -
    if tq == n_pad:
        xq = x_ref[0]
    else:
        start = pl.multiple_of(qi * tq, 128)                      # tq % 128 == 0
        xq = x_ref[0, :, pl.ds(start, tq)]
    qh = jnp.dot(wq_ref[...], xq, preferred_element_type=jnp.float32)  # (hw, tq)
    qh = jnp.maximum(qh + b_ref[0:hw, :], 0.0)

    # Head-major blocks are contiguous and sublane-aligned -> free views.
    q3 = qh.astype(cdt).reshape(heads, w, tq)                     # (h, c, q)
    k3 = kv_scr[0:hw, :].reshape(heads, w, n_keys)                # (h, c, k)
    v3 = kv_scr[hw:2 * hw, :].reshape(heads, w, n_keys)           # (h, c, k)

    # scores[h,q,k] = sum_c q3[h,c,q] * k3[h,c,k]  (no explicit Q transpose)
    s = jnp.einsum("hcq,hck->hqk", q3, k3,
                   preferred_element_type=jnp.float32)            # (h, tq, N)
    s = s - jnp.max(s, axis=-1, keepdims=True)
    e = jnp.exp(s)
    denom = jnp.sum(e, axis=-1)                                   # (h, tq)

    # Unnormalised AV matmul, then one small scale (deferred normalisation).
    o_un = jnp.einsum("hck,hqk->hcq", v3, e.astype(cdt),
                      preferred_element_type=jnp.float32)         # (h, w, tq)
    if approx:
        inv = pl.reciprocal(denom, approx=True)                   # EUP slot
    else:
        inv = 1.0 / denom                                         # exact (f32)
    o = o_un * inv[:, None, :]

    # Fusion conv: channels already in PyTorch's concat order (h*w + c).
    o_flat = o.reshape(hw, tq).astype(cdt)
    y = jnp.dot(wf_ref[...], o_flat, preferred_element_type=jnp.float32)
    y = y + b_ref[3 * hw:, :]
    out_ref[0] = jnp.maximum(y, 0.0).astype(out_ref.dtype)


def shifted_channel_multi_head(x_ncl, params, *, psi=4,
                               compute_dtype=jnp.bfloat16,
                               out_dtype=jnp.float32,
                               q_tile=1024,
                               vmem_budget_bytes=48 << 20,
                               vmem_limit_bytes=None):
    """x_ncl: (B, C_in, N) float32 (PyTorch NCL layout). Returns (B, C_out, N)."""
    B, C_in, N = x_ncl.shape
    C_out = params["wq"].shape[0]
    w = C_out // psi
    d = w // 2
    heads = 2 * psi - 1
    eps = 1e-5
    assert psi * w == C_out and w % 2 == 0, "C_out must be divisible by psi, w even"

    itemsize = jnp.dtype(compute_dtype).itemsize
    pack = 32 // itemsize                     # sublane packing: 8 f32 / 16 bf16
    w_pad = _round_up(w, pack)
    hw_pad = heads * w_pad

    # ---- fold eval-mode BatchNorm into per-channel scale / shift ------------
    def fold_bn(gamma, beta, mean, var):
        scale = gamma / jnp.sqrt(var + eps)
        return scale, beta - mean * scale

    sq, shq = fold_bn(*params["bn_q"])
    sk, shk = fold_bn(*params["bn_k"])
    sv, shv = fold_bn(*params["bn_v"])
    sf, shf = fold_bn(*params["bn_f"])
    bf = params["bf_bias"] * sf + shf         # fusion conv bias folded in too

    # ---- head-stacked weights, padded to w_pad channels per head ------------
    # row m*w_pad + c  <-  source channel m*d + c   (c < w), zero rows otherwise
    idx2 = jnp.arange(heads)[:, None] * d + jnp.arange(w_pad)[None, :]
    valid2 = (jnp.arange(w_pad) < w)[None, :]                     # (1, w_pad)
    idx = jnp.where(valid2, idx2, 0).reshape(-1)
    valid = jnp.broadcast_to(valid2, (heads, w_pad)).reshape(-1)

    def stack_fold(wmat, scale, shift):
        Ws = wmat[idx] * scale[idx][:, None]
        Ws = jnp.where(valid[:, None], Ws, 0.0)
        bs = jnp.where(valid, shift[idx], 0.0)
        return Ws, bs

    wq_h, bq_h = stack_fold(params["wq"], sq, shq)                # (hw_pad, C_in)
    wk_h, bk_h = stack_fold(params["wk"], sk, shk)
    wv_h, bv_h = stack_fold(params["wv"], sv, shv)
    wkv_h = jnp.concatenate([wk_h, wv_h], axis=0)                 # (2hw_pad, C_in)

    # fusion weights: column m*w_pad + c  <-  original column m*w + c
    col2 = jnp.arange(heads)[:, None] * w + jnp.arange(w_pad)[None, :]
    col = jnp.where(valid2, col2, 0).reshape(-1)
    wf_f = params["wf"][:, col] * sf[:, None]
    wf_f = jnp.where(valid[None, :], wf_f, 0.0)                   # (C_out, hw_pad)

    b_all = jnp.concatenate([bq_h, bk_h, bv_h, bf])[:, None].astype(jnp.float32)

    x = x_ncl.astype(compute_dtype)                               # MXU inputs
    wq_h = wq_h.astype(compute_dtype)
    wkv_h = wkv_h.astype(compute_dtype)
    wf_f = wf_f.astype(compute_dtype)

    # ---- VMEM-aware query tiling + explicit scoped-VMEM limit ---------------
    n128 = _round_up(N, 128)
    weights_bytes = 2 * (3 * hw_pad * C_in + C_out * hw_pad) * itemsize
    bias_bytes = 2 * _round_up(3 * hw_pad + C_out, 8) * 128 * 4
    fixed = (2 * C_in * n128 * itemsize            # x block (double-buffered)
             + 2 * hw_pad * N * itemsize           # kv_scr (single buffer)
             + weights_bytes + bias_bytes)
    per_q = (12 * heads * n128                     # s(f32)+e(f32)+e(cdt)+margin
             + 2 * C_out * 4                       # out block (double-buffered)
             + 4 * hw_pad * 4)                     # qh / o_un / o intermediates
    avail = vmem_budget_bytes - fixed
    tq_fit = max(128, (int(avail) // per_q) // 128 * 128) if avail > per_q * 128 else 128
    tq = min(max(128, (q_tile // 128) * 128), tq_fit)
    if tq >= N:
        tq = N
    nq = pl.cdiv(N, tq)
    n_pad = nq * tq

    if vmem_limit_bytes is None:
        vmem_limit_bytes = fixed + per_q * tq + (4 << 20)
        vmem_limit_bytes = min(max(vmem_limit_bytes, 32 << 20), 128 << 20)

    if n_pad != N:                                 # keep pl.ds slice in-bounds
        x = jnp.pad(x, ((0, 0), (0, 0), (0, n_pad - N)))

    approx = jnp.dtype(compute_dtype) != jnp.dtype(jnp.float32)

    kernel = functools.partial(_kernel, heads=heads, w=w_pad, approx=approx)
    return pl.pallas_call(
        kernel,
        out_shape=jax.ShapeDtypeStruct((B, C_out, N), out_dtype),
        grid=(B, nq),
        in_specs=[
            pl.BlockSpec((1, C_in, n_pad), lambda b, q: (b, 0, 0)),       # x
            pl.BlockSpec((hw_pad, C_in), lambda b, q: (0, 0)),            # Wq
            pl.BlockSpec((2 * hw_pad, C_in), lambda b, q: (0, 0)),        # Wk|Wv
            pl.BlockSpec((C_out, hw_pad), lambda b, q: (0, 0)),           # Wf
            pl.BlockSpec((3 * hw_pad + C_out, 1), lambda b, q: (0, 0)),   # biases
        ],
        out_specs=pl.BlockSpec((1, C_out, tq), lambda b, q: (b, 0, q)),
        scratch_shapes=[pltpu.VMEM((2 * hw_pad, N), compute_dtype)],
        compiler_params=pltpu.CompilerParams(
            dimension_semantics=("parallel", "arbitrary"),
            vmem_limit_bytes=int(vmem_limit_bytes)),
    )(x, wq_h, wkv_h, wf_f, b_all)


# ---------------- pure-JAX reference (mirrors the PyTorch forward) ----------
def reference(x, params, *, psi=4):
    eps = 1e-5

    def conv_bn_relu(x, W, bn, bias=None):
        y = jnp.einsum("oc,bcl->bol", W, x)
        if bias is not None:
            y = y + bias[None, :, None]
        gamma, beta, mean, var = bn
        y = gamma[None, :, None] * (y - mean[None, :, None]) / \
            jnp.sqrt(var[None, :, None] + eps) + beta[None, :, None]
        return jnp.maximum(y, 0.0)

    q = conv_bn_relu(x, params["wq"], params["bn_q"])
    k = conv_bn_relu(x, params["wk"], params["bn_k"])
    v = conv_bn_relu(x, params["wv"], params["bn_v"])

    C_out = params["wq"].shape[0]
    w = C_out // psi
    d = w // 2
    heads = 2 * psi - 1

    outs = []
    for m in range(heads):
        q_m = q[:, m * d:m * d + w, :]
        k_m = k[:, m * d:m * d + w, :]
        v_m = v[:, m * d:m * d + w, :]
        a = jnp.einsum("bcn,bcm->bnm", q_m, k_m)
        a = jax.nn.softmax(a, axis=-1)
        o = jnp.einsum("bnm,bcm->bnc", a, v_m)
        outs.append(jnp.transpose(o, (0, 2, 1)))
    O = jnp.concatenate(outs, axis=1)
    return conv_bn_relu(O, params["wf"], params["bn_f"], bias=params["bf_bias"])


if __name__ == "__main__":
    B, C_in, N, psi = 2, 32, 16, 4
    C_out = C_in                      # out_channels defaults to in_channels
    w = C_out // psi                  # 8
    heads = 2 * psi - 1               # 7

    key = jax.random.PRNGKey(0)
    ks = jax.random.split(key, 12)

    def bn_params(k, c):
        k1, k2, k3, k4 = jax.random.split(k, 4)
        gamma = jax.random.uniform(k1, (c,), minval=0.5, maxval=1.5)
        beta = 0.1 * jax.random.normal(k2, (c,))
        mean = 0.1 * jax.random.normal(k3, (c,))
        var = jax.random.uniform(k4, (c,), minval=0.5, maxval=1.5)
        return (gamma, beta, mean, var)

    params = {
        "wq": 0.2 * jax.random.normal(ks[0], (C_out, C_in)),
        "wk": 0.2 * jax.random.normal(ks[1], (C_out, C_in)),
        "wv": 0.2 * jax.random.normal(ks[2], (C_out, C_in)),
        "wf": 0.2 * jax.random.normal(ks[3], (C_out, heads * w)),
        "bf_bias": 0.1 * jax.random.normal(ks[4], (C_out,)),
        "bn_q": bn_params(ks[5], C_out),
        "bn_k": bn_params(ks[6], C_out),
        "bn_v": bn_params(ks[7], C_out),
        "bn_f": bn_params(ks[8], C_out),
    }
    params = jax.tree.map(lambda a: a.astype(jnp.float32), params)

    x = jax.random.normal(ks[9], (B, C_in, N), dtype=jnp.float32)

    ref = reference(x, params, psi=psi)

    # 1) f32 path: tight check that the kernel reproduces the PyTorch forward.
    out_f32 = shifted_channel_multi_head(x, params, psi=psi,
                                         compute_dtype=jnp.float32)
    out_f32 = jax.block_until_ready(out_f32)
    assert out_f32.shape == (B, C_out, N)
    err32 = float(jnp.max(jnp.abs(out_f32 - ref)))
    assert jnp.allclose(out_f32, ref, rtol=2e-4, atol=2e-4), \
        f"f32 path max abs err {err32}"

    # 2) bf16 fast path (production default): bf16 MXU inputs, f32 accumulation.
    out_bf16 = shifted_channel_multi_head(x, params, psi=psi)
    out_bf16 = jax.block_until_ready(out_bf16)
    assert out_bf16.shape == (B, C_out, N)
    scale = float(jnp.maximum(jnp.max(jnp.abs(ref)), 1.0))
    rel = float(jnp.max(jnp.abs(out_bf16 - ref))) / scale
    assert rel < 0.1, f"bf16 path relative err {rel}"

    print("KERNEL_OK")
</pallas_src>

<mosaic_0001>
module attributes {stable_mosaic.version = 11 : i64} {
  func.func @_kernel(%arg0: i32, %arg1: i32, %arg2: memref<1x32x16xf32, #tpu.memory_space<vmem>>, %arg3: memref<56x32xf32, #tpu.memory_space<vmem>>, %arg4: memref<112x32xf32, #tpu.memory_space<vmem>>, %arg5: memref<32x56xf32, #tpu.memory_space<vmem>>, %arg6: memref<200x1xf32, #tpu.memory_space<vmem>>, %arg7: memref<1x32x16xf32, #tpu.memory_space<vmem>>, %arg8: memref<112x16xf32, #tpu.memory_space<vmem>>) attributes {dimension_semantics = [#tpu.dimension_semantics<parallel>, #tpu.dimension_semantics<arbitrary>], iteration_bounds = array<i64: 2, 1>, scalar_prefetch = 0 : i64, scratch_operands = 1 : i64, tpu.core_type = #tpu.core_type<tc>, window_params = [{transform_indices = @transform_0, window_bounds = array<i64: 1, 32, 16>}, {pipeline_mode = #tpu.pipeline_mode<synchronous>, transform_indices = @transform_1, window_bounds = array<i64: 56, 32>}, {pipeline_mode = #tpu.pipeline_mode<synchronous>, transform_indices = @transform_2, window_bounds = array<i64: 112, 32>}, {pipeline_mode = #tpu.pipeline_mode<synchronous>, transform_indices = @transform_3, window_bounds = array<i64: 32, 56>}, {pipeline_mode = #tpu.pipeline_mode<synchronous>, transform_indices = @transform_4, window_bounds = array<i64: 200, 1>}, {transform_indices = @transform_5, window_bounds = array<i64: 1, 32, 16>}]} {
    %c0_i32 = arith.constant 0 : i32
    %0 = arith.cmpi eq, %arg1, %c0_i32 : i32
    %1 = arith.extui %0 : i1 to i32
    %c0_i32_0 = arith.constant 0 : i32
    %2 = arith.cmpi ne, %1, %c0_i32_0 : i32
    scf.if %2 {
      %c0_24 = arith.constant 0 : index
      %c0_25 = arith.constant 0 : index
      %41 = vector.load %arg4[%c0_24, %c0_25] : memref<112x32xf32, #tpu.memory_space<vmem>>, vector<112x32xf32>
      %c0_26 = arith.constant 0 : index
      %c0_27 = arith.constant 0 : index
      %c0_28 = arith.constant 0 : index
      %42 = vector.load %arg2[%c0_26, %c0_27, %c0_28] : memref<1x32x16xf32, #tpu.memory_space<vmem>>, vector<1x32x16xf32>
      %43 = vector.shape_cast %42 : vector<1x32x16xf32> to vector<32x16xf32>
      %cst_29 = arith.constant dense<0.000000e+00> : vector<112x16xf32>
      %44 = tpu.matmul %41, %43, %cst_29 {dimension_numbers = #tpu.dot_dimension_numbers<[1], [0], [0], [1], [0, 0, 1, 1], [], []>} : vector<112x32xf32>, vector<32x16xf32>, vector<112x16xf32> -> vector<112x16xf32>
      %c56_30 = arith.constant 56 : index
      %c0_31 = arith.constant 0 : index
      %45 = vector.load %arg6[%c56_30, %c0_31] : memref<200x1xf32, #tpu.memory_space<vmem>>, vector<112x1xf32>
      %46 = vector.broadcast %45 : vector<112x1xf32> to vector<112x16xf32>
      %47 = arith.addf %44, %46 : vector<112x16xf32>
      %cst_32 = arith.constant 0.000000e+00 : f32
      %48 = vector.broadcast %cst_32 : f32 to vector<112x16xf32>
      %49 = arith.maximumf %47, %48 : vector<112x16xf32>
      %c0_33 = arith.constant 0 : index
      %c0_34 = arith.constant 0 : index
      %50 = vector.load %arg8[%c0_33, %c0_34] : memref<112x16xf32, #tpu.memory_space<vmem>>, vector<112x16xf32>
      tpu.vector_store %arg8[%c0_33, %c0_34], %49 {strides = array<i32>} : memref<112x16xf32, #tpu.memory_space<vmem>>, vector<112x16xf32>,
    } else {
    }
    %c0 = arith.constant 0 : index
    %c0_1 = arith.constant 0 : index
    %c0_2 = arith.constant 0 : index
    %3 = vector.load %arg2[%c0, %c0_1, %c0_2] : memref<1x32x16xf32, #tpu.memory_space<vmem>>, vector<1x32x16xf32>
    %4 = vector.shape_cast %3 : vector<1x32x16xf32> to vector<32x16xf32>
    %c0_3 = arith.constant 0 : index
    %c0_4 = arith.constant 0 : index
    %5 = vector.load %arg3[%c0_3, %c0_4] : memref<56x32xf32, #tpu.memory_space<vmem>>, vector<56x32xf32>
    %cst = arith.constant dense<0.000000e+00> : vector<56x16xf32>
    %6 = tpu.matmul %5, %4, %cst {dimension_numbers = #tpu.dot_dimension_numbers<[1], [0], [0], [1], [0, 0, 1, 1], [], []>} : vector<56x32xf32>, vector<32x16xf32>, vector<56x16xf32> -> vector<56x16xf32>
    %c0_5 = arith.constant 0 : index
    %c0_6 = arith.constant 0 : index
    %7 = vector.load %arg6[%c0_5, %c0_6] : memref<200x1xf32, #tpu.memory_space<vmem>>, vector<56x1xf32>
    %8 = vector.broadcast %7 : vector<56x1xf32> to vector<56x16xf32>
    %9 = arith.addf %6, %8 : vector<56x16xf32>
    %cst_7 = arith.constant 0.000000e+00 : f32
    %10 = vector.broadcast %cst_7 : f32 to vector<56x16xf32>
    %11 = arith.maximumf %9, %10 : vector<56x16xf32>
    %12 = vector.shape_cast %11 : vector<56x16xf32> to vector<7x8x16xf32>
    %c0_8 = arith.constant 0 : index
    %c0_9 = arith.constant 0 : index
    %13 = vector.load %arg8[%c0_8, %c0_9] : memref<112x16xf32, #tpu.memory_space<vmem>>, vector<56x16xf32>
    %14 = vector.shape_cast %13 : vector<56x16xf32> to vector<7x8x16xf32>
    %c56 = arith.constant 56 : index
    %c0_10 = arith.constant 0 : index
    %15 = vector.load %arg8[%c56, %c0_10] : memref<112x16xf32, #tpu.memory_space<vmem>>, vector<56x16xf32>
    %16 = vector.shape_cast %15 : vector<56x16xf32> to vector<7x8x16xf32>
    "tpu.trace_start"() <{level = 10 : i32, message = "hcq,hck->hqk"}> : () -> ()
    %cst_11 = arith.constant dense<0.000000e+00> : vector<7x16x16xf32>
    %17 = tpu.matmul %12, %14, %cst_11 {dimension_numbers = #tpu.dot_dimension_numbers<[1], [1], [2], [2], [0, 0, 0, 2, 1, 2], [0], [0]>} : vector<7x8x16xf32>, vector<7x8x16xf32>, vector<7x16x16xf32> -> vector<7x16x16xf32>
    "tpu.trace_stop"() : () -> ()
    %cst_12 = arith.constant dense<0xFF800000> : vector<7x16xf32>
    %18 = vector.multi_reduction <maximumf>, %17, %cst_12 [2] : vector<7x16x16xf32> to vector<7x16xf32>
    %19 = vector.shape_cast %18 : vector<7x16xf32> to vector<7x16x1xf32>
    %20 = vector.broadcast %19 : vector<7x16x1xf32> to vector<7x16x16xf32>
    %21 = arith.subf %17, %20 : vector<7x16x16xf32>
    %22 = math.exp %21 : vector<7x16x16xf32>
    %cst_13 = arith.constant dense<0.000000e+00> : vector<7x16xf32>
    %23 = vector.multi_reduction <add>, %22, %cst_13 [2] : vector<7x16x16xf32> to vector<7x16xf32>
    "tpu.trace_start"() <{level = 10 : i32, message = "hck,hqk->hcq"}> : () -> ()
    %cst_14 = arith.constant dense<0.000000e+00> : vector<7x8x16xf32>
    %24 = tpu.matmul %16, %22, %cst_14 {dimension_numbers = #tpu.dot_dimension_numbers<[2], [2], [1], [1], [0, 0, 0, 1, 1, 1], [0], [0]>} : vector<7x8x16xf32>, vector<7x16x16xf32>, vector<7x8x16xf32> -> vector<7x8x16xf32>
    "tpu.trace_stop"() : () -> ()
    %cst_15 = arith.constant 1.000000e+00 : f32
    %25 = vector.broadcast %cst_15 : f32 to vector<7x16xf32>
    %26 = arith.divf %25, %23 : vector<7x16xf32>
    %27 = vector.shape_cast %26 : vector<7x16xf32> to vector<7x1x16xf32>
    %28 = vector.broadcast %27 : vector<7x1x16xf32> to vector<7x8x16xf32>
    %29 = arith.mulf %24, %28 : vector<7x8x16xf32>
    %30 = vector.shape_cast %29 : vector<7x8x16xf32> to vector<56x16xf32>
    %c0_16 = arith.constant 0 : index
    %c0_17 = arith.constant 0 : index
    %31 = vector.load %arg5[%c0_16, %c0_17] : memref<32x56xf32, #tpu.memory_space<vmem>>, vector<32x56xf32>
    %cst_18 = arith.constant dense<0.000000e+00> : vector<32x16xf32>
    %32 = tpu.matmul %31, %30, %cst_18 {dimension_numbers = #tpu.dot_dimension_numbers<[1], [0], [0], [1], [0, 0, 1, 1], [], []>} : vector<32x56xf32>, vector<56x16xf32>, vector<32x16xf32> -> vector<32x16xf32>
    %c168 = arith.constant 168 : index
    %c0_19 = arith.constant 0 : index
    %33 = vector.load %arg6[%c168, %c0_19] : memref<200x1xf32, #tpu.memory_space<vmem>>, vector<32x1xf32>
    %34 = vector.broadcast %33 : vector<32x1xf32> to vector<32x16xf32>
    %35 = arith.addf %32, %34 : vector<32x16xf32>
    %cst_20 = arith.constant 0.000000e+00 : f32
    %36 = vector.broadcast %cst_20 : f32 to vector<32x16xf32>
    %37 = arith.maximumf %35, %36 : vector<32x16xf32>
    %c0_21 = arith.constant 0 : index
    %c0_22 = arith.constant 0 : index
    %c0_23 = arith.constant 0 : index
    %38 = vector.load %arg7[%c0_21, %c0_22, %c0_23] : memref<1x32x16xf32, #tpu.memory_space<vmem>>, vector<1x32x16xf32>
    %39 = vector.shape_cast %38 : vector<1x32x16xf32> to vector<32x16xf32>
    %40 = vector.shape_cast %37 : vector<32x16xf32> to vector<1x32x16xf32>
    tpu.vector_store %arg7[%c0_21, %c0_22, %c0_23], %40 {strides = array<i32>} : memref<1x32x16xf32, #tpu.memory_space<vmem>>, vector<1x32x16xf32>,
    return
  }
  func.func @transform_0(%arg0: i32, %arg1: i32) -> (i32, i32, i32) {
    %c0_i32 = arith.constant 0 : i32
    %c0_i32_0 = arith.constant 0 : i32
    %c0_i32_1 = arith.constant 0 : i32
    return %arg0, %c0_i32, %c0_i32_0 : i32, i32, i32
  }
  func.func @transform_1(%arg0: i32, %arg1: i32) -> (i32, i32) {
    %c0_i32 = arith.constant 0 : i32
    %c0_i32_0 = arith.constant 0 : i32
    %c0_i32_1 = arith.constant 0 : i32
    return %c0_i32, %c0_i32_0 : i32, i32
  }
  func.func @transform_2(%arg0: i32, %arg1: i32) -> (i32, i32) {
    %c0_i32 = arith.constant 0 : i32
    %c0_i32_0 = arith.constant 0 : i32
    %c0_i32_1 = arith.constant 0 : i32
    return %c0_i32, %c0_i32_0 : i32, i32
  }
  func.func @transform_3(%arg0: i32, %arg1: i32) -> (i32, i32) {
    %c0_i32 = arith.constant 0 : i32
    %c0_i32_0 = arith.constant 0 : i32
    %c0_i32_1 = arith.constant 0 : i32
    return %c0_i32, %c0_i32_0 : i32, i32
  }
  func.func @transform_4(%arg0: i32, %arg1: i32) -> (i32, i32) {
    %c0_i32 = arith.constant 0 : i32
    %c0_i32_0 = arith.constant 0 : i32
    %c0_i32_1 = arith.constant 0 : i32
    return %c0_i32, %c0_i32_0 : i32, i32
  }
  func.func @transform_5(%arg0: i32, %arg1: i32) -> (i32, i32, i32) {
    %c0_i32 = arith.constant 0 : i32
    %c0_i32_0 = arith.constant 0 : i32
    return %arg0, %c0_i32, %arg1 : i32, i32, i32
  }
}

</mosaic_0001>

<llo_original>
// kernel: tpu_custom_call.1
$region0: #{tpu_custom_call.1}
  #allocation0 [shape = 'u32[]', space=smem, size = 0x4, offset = 0x4, fixed_abs, tag = 'smem constant byte address 0x4 - core index']
  #allocation1 [shape = 'u32[72,128]{1,0:T(1,128)}', space=vmem, size = 0x9000, scoped, tag = 'internal scratch']
  #allocation2 [shape = 'f32[112,16]{1,0:T(8,128)}', space=vmem, size = 0xe000, scoped, tag = 'scratch operand']
  %s0 = inlined_call_operand.vmem [shape: f32[2,32,16], index: 0, kind: input, shape index: {}]
  %s1 = inlined_call_operand.vmem [shape: f32[56,32], index: 1, kind: input, shape index: {}]
  %s2 = inlined_call_operand.vmem [shape: f32[112,32], index: 2, kind: input, shape index: {}]
  %s3 = inlined_call_operand.vmem [shape: f32[32,56], index: 3, kind: input, shape index: {}]
  %s4 = inlined_call_operand.vmem [shape: f32[200,1], index: 4, kind: input, shape index: {}]
  %s5 = inlined_call_operand.vmem [shape: f32[2,32,16], index: 5, kind: output, shape index: {}]
  %s6 = sld [smem:[#allocation0]]
  $region57: #{tpu_custom_call.1} parent=0
    _
  %s8 = ssub.s32 1, %s6
  %s9 = scalar_select 0, %s8, %s6
  loop: start=0, step=1, limit=4
  $region2: #{tpu_custom_call.1} parent=0 // loop_pre_header
    _
  $region3: #{tpu_custom_call.1} parent=0 // loop_header
    %s11 = sphi 0, %s15
    %p12 = scmp.ge.s32.totalorder %s11, 4
    %s18 = sphi 0, %s30
    %s19 = sphi 0, %s26
    %s20 = sphi 0, %s18
    %s21 = sphi 0, %s19
    %s22 = sphi 0, %s20
    %s23 = sphi 0, %s21
    %s33 = sphi 0, %s35
    %s36 = sphi 0, %s33
    %s37 = sphi 0, %s36
    %s53 = sphi 0, %s37
    %s57 = sphi 0, %s57
    %s59 = sphi 0, %s57
    %s60 = sphi 0, %s59
    %s74 = sphi 0, %s60
    %s78 = sphi 0, %s78
    %s80 = sphi 0, %s78
    %s81 = sphi 0, %s80
    %s95 = sphi 0, %s81
    %s99 = sphi 0, %s99
    %s101 = sphi 0, %s99
    %s102 = sphi 0, %s101
    %s116 = sphi 0, %s102
    %s120 = sphi 0, %s120
    %s122 = sphi 0, %s120
    %s123 = sphi 0, %s122
    %s137 = sphi 0, %s123
    %s145 = sphi 0, %s147
    %s148 = sphi 0, %s145
    %s149 = sphi 0, %s148
    %s165 = sphi 0, %s149
  $region4: #{tpu_custom_call.1} parent=0 // loop_header_branch
    %14 = sbr.rel (%p12) target = $region8
  $region5: #{tpu_custom_call.1} parent=0 // loop_body
    %s16 = ssub.s32 %s11, 1
    %s17 = ssub.s32 %s11, 2
    %s24 = sadd.s32 1, %s19
    %p25 = scmp.ge.s32.totalorder %s24, 1
    %s26 = scalar_select %p25, 0, %s24
    %s27 = sadd.s32 1, %s18
    %s28 = scalar_select %p25, %s27, %s18
    %p29 = scmp.ge.s32.totalorder %s28, 2
    %s30 = scalar_select %p29, 0, %s28
    %s31 = ssub.s32 %s18, %s30
    %p32 = scmp.eq.s32.totalorder %s31, 0
    %s34 = sadd.s32 %s33, 1
    %s35 = scalar_select %p32, %s33, %s34
    %p38 = pneg %p32
    %p39 = scmp.eq.s32.totalorder %s11, 1
    %p40 = por %p38, %p39
    %p41 = scmp.ne.s32.totalorder %s33, %s36
    %p42 = scmp.eq.s32.totalorder %s11, 0
    %p43 = por %p41, %p42
    %p44 = scmp.ne.s32.totalorder %s33, %s36
    %p45 = scmp.eq.s32.totalorder %s16, 1
    %p46 = por %p44, %p45
    %p47 = scmp.ne.s32.totalorder %s36, %s37
    %p48 = scmp.eq.s32.totalorder %s16, 0
    %p49 = por %p47, %p48
    %p50 = scmp.ne.s32.totalorder %s36, %s37
    %p51 = scmp.eq.s32.totalorder %s17, 1
    %p52 = por %p50, %p51
    %p54 = scmp.ne.s32.totalorder %s37, %s53
    %p55 = scmp.eq.s32.totalorder %s17, 0
    %p56 = por %p54, %p55
    %s58 = sadd.s32 %s57, 1
    %p61 = scmp.eq.s32.totalorder %s11, 1
    %p62 = scmp.ne.s32.totalorder %s57, %s59
    %p63 = scmp.eq.s32.totalorder %s11, 0
    %p64 = por %p62, %p63
    %p65 = scmp.ne.s32.totalorder %s57, %s59
    %p66 = scmp.eq.s32.totalorder %s16, 1
    %p67 = por %p65, %p66
    %p68 = scmp.ne.s32.totalorder %s59, %s60
    %p69 = scmp.eq.s32.totalorder %s16, 0
    %p70 = por %p68, %p69
    %p71 = scmp.ne.s32.totalorder %s59, %s60
    %p72 = scmp.eq.s32.totalorder %s17, 1
    %p73 = por %p71, %p72
    %p75 = scmp.ne.s32.totalorder %s60, %s74
    %p76 = scmp.eq.s32.totalorder %s17, 0
    %p77 = por %p75, %p76
    %s79 = sadd.s32 %s78, 1
    %p82 = scmp.eq.s32.totalorder %s11, 1
    %p83 = scmp.ne.s32.totalorder %s78, %s80
    %p84 = scmp.eq.s32.totalorder %s11, 0
    %p85 = por %p83, %p84
    %p86 = scmp.ne.s32.totalorder %s78, %s80
    %p87 = scmp.eq.s32.totalorder %s16, 1
    %p88 = por %p86, %p87
    %p89 = scmp.ne.s32.totalorder %s80, %s81
    %p90 = scmp.eq.s32.totalorder %s16, 0
    %p91 = por %p89, %p90
    %p92 = scmp.ne.s32.totalorder %s80, %s81
    %p93 = scmp.eq.s32.totalorder %s17, 1
    %p94 = por %p92, %p93
    %p96 = scmp.ne.s32.totalorder %s81, %s95
    %p97 = scmp.eq.s32.totalorder %s17, 0
    %p98 = por %p96, %p97
    %s100 = sadd.s32 %s99, 1
    %p103 = scmp.eq.s32.totalorder %s11, 1
    %p104 = scmp.ne.s32.totalorder %s99, %s101
    %p105 = scmp.eq.s32.totalorder %s11, 0
    %p106 = por %p104, %p105
    %p107 = scmp.ne.s32.totalorder %s99, %s101
    %p108 = scmp.eq.s32.totalorder %s16, 1
    %p109 = por %p107, %p108
    %p110 = scmp.ne.s32.totalorder %s101, %s102
    %p111 = scmp.eq.s32.totalorder %s16, 0
    %p112 = por %p110, %p111
    %p113 = scmp.ne.s32.totalorder %s101, %s102
    %p114 = scmp.eq.s32.totalorder %s17, 1
    %p115 = por %p113, %p114
    %p117 = scmp.ne.s32.totalorder %s102, %s116
    %p118 = scmp.eq.s32.totalorder %s17, 0
    %p119 = por %p117, %p118
    %s121 = sadd.s32 %s120, 1
    %p124 = scmp.eq.s32.totalorder %s11, 1
    %p125 = scmp.ne.s32.totalorder %s120, %s122
    %p126 = scmp.eq.s32.totalorder %s11, 0
    %p127 = por %p125, %p126
    %p128 = scmp.ne.s32.totalorder %s120, %s122
    %p129 = scmp.eq.s32.totalorder %s16, 1
    %p130 = por %p128, %p129
    %p131 = scmp.ne.s32.totalorder %s122, %s123
    %p132 = scmp.eq.s32.totalorder %s16, 0
    %p133 = por %p131, %p132
    %p134 = scmp.ne.s32.totalorder %s122, %s123
    %p135 = scmp.eq.s32.totalorder %s17, 1
    %p136 = por %p134, %p135
    %p138 = scmp.ne.s32.totalorder %s123, %s137
    %p139 = scmp.eq.s32.totalorder %s17, 0
    %p140 = por %p138, %p139
    %s141 = ssub.s32 %s18, %s30
    %s142 = ssub.s32 %s19, %s26
    %s143 = sor.u32 %s141, %s142
    %p144 = scmp.eq.s32.totalorder %s143, 0
    %s146 = sadd.s32 %s145, 1
    %s147 = scalar_select %p144, %s145, %s146
    %p150 = pneg %p144
    %p151 = scmp.eq.s32.totalorder %s11, 1
    %p152 = por %p150, %p151
    %p153 = scmp.ne.s32.totalorder %s145, %s148
    %p154 = scmp.eq.s32.totalorder %s11, 0
    %p155 = por %p153, %p154
    %p156 = scmp.ne.s32.totalorder %s145, %s148
    %p157 = scmp.eq.s32.totalorder %s16, 1
    %p158 = por %p156, %p157
    %p159 = scmp.ne.s32.totalorder %s148, %s149
    %p160 = scmp.eq.s32.totalorder %s16, 0
    %p161 = por %p159, %p160
    %p162 = scmp.ne.s32.totalorder %s148, %s149
    %p163 = scmp.eq.s32.totalorder %s17, 1
    %p164 = por %p162, %p163
    %p166 = scmp.ne.s32.totalorder %s149, %s165
    %p167 = scmp.eq.s32.totalorder %s17, 0
    %p168 = por %p166, %p167
    %p169 = scmp.le.s32.totalorder 1, %s11
    %p170 = scmp.lt.s32.totalorder %s11, 3
    %p171 = pnand %p169, %p170
    %p172 = pneg %p171
    // Predicated region
    $region9: #{tpu_custom_call.1} parent=5 // pred_check
      _
    $region10: #{tpu_custom_call.1} parent=5 // pred_check_branch
      %174 = sbr.rel (%p171) target = $region12
    $region11: #{tpu_custom_call.1} parent=5 // pred_region
      %s175 = ssub.s32 %s11, 1
      // Predicated region
      $region13: #{tpu_custom_call.1} parent=11 // pred_check
        %p176 = pneg %p70
      $region14: #{tpu_custom_call.1} parent=11 // pred_check_branch
        %178 = sbr.rel (%p176) target = $region16
      $region15: #{tpu_custom_call.1} parent=11 // pred_region
        _
      $region16: #{tpu_custom_call.1} parent=11 // pred_fallthru
        _
      // Predicated region
      $region17: #{tpu_custom_call.1} parent=11 // pred_check
        %p179 = pneg %p91
      $region18: #{tpu_custom_call.1} parent=11 // pred_check_branch
        %181 = sbr.rel (%p179) target = $region20
      $region19: #{tpu_custom_call.1} parent=11 // pred_region
        _
      $region20: #{tpu_custom_call.1} parent=11 // pred_fallthru
        _
      // Predicated region
      $region21: #{tpu_custom_call.1} parent=11 // pred_check
        %p182 = pneg %p112
      $region22: #{tpu_custom_call.1} parent=11 // pred_check_branch
        %184 = sbr.rel (%p182) target = $region24
      $region23: #{tpu_custom_call.1} parent=11 // pred_region
        _
      $region24: #{tpu_custom_call.1} parent=11 // pred_fallthru
        _
      // Predicated region
      $region25: #{tpu_custom_call.1} parent=11 // pred_check
        %p185 = pneg %p133
      $region26: #{tpu_custom_call.1} parent=11 // pred_check_branch
        %187 = sbr.rel (%p185) target = $region28
      $region27: #{tpu_custom_call.1} parent=11 // pred_region
        _
      $region28: #{tpu_custom_call.1} parent=11 // pred_fallthru
        _
    $region12: #{tpu_custom_call.1} parent=5 // pred_fallthru
      _
    %p188 = scmp.lt.s32.totalorder %s11, 2
    // Predicated region
    $region29: #{tpu_custom_call.1} parent=5 // pred_check
      %p189 = pneg %p188
    $region30: #{tpu_custom_call.1} parent=5 // pred_check_branch
      %191 = sbr.rel (%p189) target = $region32
    $region31: #{tpu_custom_call.1} parent=5 // pred_region
      // Predicated region
      $region33: #{tpu_custom_call.1} parent=31 // pred_check
        %p192 = pneg %p43
      $region34: #{tpu_custom_call.1} parent=31 // pred_check_branch
        %194 = sbr.rel (%p192) target = $region36
      $region35: #{tpu_custom_call.1} parent=31 // pred_region
        %p195 = scmp.lt.s32.totalorder %s18, 1
        %s196 = scalar_select %p195, %s18, 1
        %s197 = smul.addr %s196, 4
        %s198 = smul.addr %s197, 8
        %s199 = scalar_lea.vmem %s0, %s198
      $region36: #{tpu_custom_call.1} parent=31 // pred_fallthru
        _
    $region32: #{tpu_custom_call.1} parent=5 // pred_fallthru
      _
    %p200 = scmp.le.s32.totalorder 1, %s11
    %p201 = scmp.lt.s32.totalorder %s11, 3
    %p202 = pnand %p200, %p201
    %p203 = pneg %p202
    // Predicated region
    $region37: #{tpu_custom_call.1} parent=5 // pred_check
      _
    $region38: #{tpu_custom_call.1} parent=5 // pred_check_branch
      %205 = sbr.rel (%p202) target = $region40
    $region39: #{tpu_custom_call.1} parent=5 // pred_region
      %s206 = ssub.s32 %s11, 1
      %p207 = scmp.lt.s32.totalorder %s20, 1
      %s208 = scalar_select %p207, %s20, 1
      %s209 = smul.addr %s208, 4
      %s210 = smul.addr %s209, 8
      %s211 = scalar_lea.vmem %s0, %s210
      %p212 = pneg %p49
      %p213 = pneg %p46
      %p214 = pneg %p70
      %p215 = pneg %p67
      %p216 = pneg %p91
      %p217 = pneg %p88
      %p218 = pneg %p112
      %p219 = pneg %p109
      %p220 = pneg %p133
      %p221 = pneg %p130
      %p222 = pneg %p161
      %p223 = pneg %p158
      %p224 = scmp.lt.s32.totalorder %s20, 1
      %s225 = scalar_select %p224, %s20, 1
      %p226 = scmp.lt.s32.totalorder %s21, 0
      %s227 = scalar_select %p226, %s21, 0
      %s228 = smul.addr %s225, 4
      %s229 = sadd.s32 %s227, %s228
      %s230 = smul.addr %s229, 8
      %s231 = scalar_lea.vmem %s5, %s230
      %p232 = scmp.lt.s32.totalorder %s20, 1
      %s233 = scalar_select %p232, %s20, 1
      %s234 = smul.addr %s233, 4
      %s235 = smul.addr %s234, 8
      %s236 = scalar_lea.vmem %s0, %s235
      %p237 = scmp.lt.s32.totalorder %s20, 1
      %s238 = scalar_select %p237, %s20, 1
      %p239 = scmp.lt.s32.totalorder %s21, 0
      %s240 = scalar_select %p239, %s21, 0
      %s241 = smul.addr %s238, 4
      %s242 = sadd.s32 %s240, %s241
      %s243 = smul.addr %s242, 8
      %s244 = scalar_lea.vmem %s5, %s243
      %p245 = scmp.eq.s32.totalorder %s21, 0
      // Predicated region
      $region41: #{tpu_custom_call.1} parent=39 // pred_check
        %p246 = pneg %p245
      $region42: #{tpu_custom_call.1} parent=39 // pred_check_branch
        %248 = sbr.rel (%p246) target = $region44
      $region43: #{tpu_custom_call.1} parent=39 // pred_region
        %v249 = vld [vmem:[%s2] sm:$0xff]
        %v250 = vld [vmem:[%s2 + $0x8] sm:$0xff]
        %v251 = vld [vmem:[%s2 + $0x10] sm:$0xff]
        %v252 = vld [vmem:[%s2 + $0x18] sm:$0xff]
        %v253 = vld [vmem:[%s2 + $0x20] sm:$0xff]
        %v254 = vld [vmem:[%s2 + $0x28] sm:$0xff]
        %v255 = vld [vmem:[%s2 + $0x30] sm:$0xff]
        %v256 = vld [vmem:[%s2 + $0x38] sm:$0xff]
        %v257 = vld [vmem:[%s2 + $0x40] sm:$0xff]
        %v258 = vld [vmem:[%s2 + $0x48] sm:$0xff]
        %v259 = vld [vmem:[%s2 + $0x50] sm:$0xff]
        %v260 = vld [vmem:[%s2 + $0x58] sm:$0xff]
        %v261 = vld [vmem:[%s2 + $0x60] sm:$0xff]
        %v262 = vld [vmem:[%s2 + $0x68] sm:$0xff]
        %v263 = vld [vmem:[%s236] sm:$0xff]
        %v264 = vld [vmem:[%s236 + $0x8] sm:$0xff]
        %v265 = vld [vmem:[%s236 + $0x10] sm:$0xff]
        %v266 = vld [vmem:[%s236 + $0x18] sm:$0xff]
        %v267 = vld [vmem:[%s4 + $0x38] sm:$0xff]
        %v268 = vld [vmem:[%s4 + $0x40] sm:$0xff]
        %v269 = vld [vmem:[%s4 + $0x48] sm:$0xff]
        %v270 = vld [vmem:[%s4 + $0x50] sm:$0xff]
        %v271 = vld [vmem:[%s4 + $0x58] sm:$0xff]
        %v272 = vld [vmem:[%s4 + $0x60] sm:$0xff]
        %v273 = vld [vmem:[%s4 + $0x68] sm:$0xff]
        %v274 = vld [vmem:[%s4 + $0x70] sm:$0xff]
        %v275 = vld [vmem:[%s4 + $0x78] sm:$0xff]
        %v276 = vld [vmem:[%s4 + $0x80] sm:$0xff]
        %v277 = vld [vmem:[%s4 + $0x88] sm:$0xff]
        %v278 = vld [vmem:[%s4 + $0x90] sm:$0xff]
        %v279 = vld [vmem:[%s4 + $0x98] sm:$0xff]
        %v280 = vld [vmem:[%s4 + $0xa0] sm:$0xff]
        %282 = vset.pattern.permute.xlu0 0
        %283 = vperm.xlu0 %282, %v267
        %v284 = vpop.permute.xlu0 %283
        %287 = vset.pattern.permute.xlu0 0
        %288 = vperm.xlu0 %287, %v268
        %v289 = vpop.permute.xlu0 %288
        %292 = vset.pattern.permute.xlu0 0
        %293 = vperm.xlu0 %292, %v269
        %v294 = vpop.permute.xlu0 %293
        %297 = vset.pattern.permute.xlu0 0
        %298 = vperm.xlu0 %297, %v270
        %v299 = vpop.permute.xlu0 %298
        %302 = vset.pattern.permute.xlu0 0
        %303 = vperm.xlu0 %302, %v271
        %v304 = vpop.permute.xlu0 %303
        %307 = vset.pattern.permute.xlu0 0
        %308 = vperm.xlu0 %307, %v272
        %v309 = vpop.permute.xlu0 %308
        %312 = vset.pattern.permute.xlu0 0
        %313 = vperm.xlu0 %312, %v273
        %v314 = vpop.permute.xlu0 %313
        %317 = vset.pattern.permute.xlu0 0
        %318 = vperm.xlu0 %317, %v274
        %v319 = vpop.permute.xlu0 %318
        %322 = vset.pattern.permute.xlu0 0
        %323 = vperm.xlu0 %322, %v275
        %v324 = vpop.permute.xlu0 %323
        %327 = vset.pattern.permute.xlu0 0
        %328 = vperm.xlu0 %327, %v276
        %v329 = vpop.permute.xlu0 %328
        %332 = vset.pattern.permute.xlu0 0
        %333 = vperm.xlu0 %332, %v277
        %v334 = vpop.permute.xlu0 %333
        %337 = vset.pattern.permute.xlu0 0
        %338 = vperm.xlu0 %337, %v278
        %v339 = vpop.permute.xlu0 %338
        %342 = vset.pattern.permute.xlu0 0
        %343 = vperm.xlu0 %342, %v279
        %v344 = vpop.permute.xlu0 %343
        %347 = vset.pattern.permute.xlu0 0
        %348 = vperm.xlu0 %347, %v280
        %v349 = vpop.permute.xlu0 %348
        %vm351 = vcmask 261120
        %v353 = vsel %vm351, %v249, 0
        %v356 = vsel %vm351, %v250, 0
        %v359 = vsel %vm351, %v251, 0
        %v362 = vsel %vm351, %v252, 0
        %v365 = vsel %vm351, %v253, 0
        %v368 = vsel %vm351, %v254, 0
        %v371 = vsel %vm351, %v255, 0
        %v374 = vsel %vm351, %v256, 0
        %v377 = vsel %vm351, %v257, 0
        %v380 = vsel %vm351, %v258, 0
        %v383 = vsel %vm351, %v259, 0
        %v386 = vsel %vm351, %v260, 0
        %v389 = vsel %vm351, %v261, 0
        %v392 = vsel %vm351, %v262, 0
        %394 = vmatpush.msra.mxu0 0.0
        %395 = vmatpush.msra.mxu0 0.0
        %396 = vmatpush.msra.mxu0 0.0
        %397 = vmatpush.msra.mxu0 0.0
        %398 = vmatpush.msra.mxu0 0.0
        %399 = vmatpush.msra.mxu0 0.0
        %400 = vmatpush.msra.mxu0 0.0
        %401 = vmatpush.msra.mxu0 0.0
        %402 = vmatpush.msra.mxu0 0.0
        %403 = vmatpush.msra.mxu0 0.0
        %404 = vmatpush.msra.mxu0 0.0
        %405 = vmatpush.msra.mxu0 0.0
        %406 = vmatpush.msra.mxu0 %v266
        %407 = vmatpush.msra.mxu0 %v265
        %408 = vmatpush.msra.mxu0 %v264
        %409 = vmatpush.msra.mxu0 %v263
        %410 = vmatmul.f32.gmra.mxu0 %v353
        %v411 = vpop.f32.mrf.mxu0
        %v412 = vadd.f32 %v284, %v411
        %413 = vmatmul.f32.gmra.mxu0 %v356
        %v414 = vpop.f32.mrf.mxu0
        %v415 = vadd.f32 %v289, %v414
        %416 = vmatmul.f32.gmra.mxu0 %v359
        %v417 = vpop.f32.mrf.mxu0
        %v418 = vadd.f32 %v294, %v417
        %419 = vmatmul.f32.gmra.mxu0 %v362
        %v420 = vpop.f32.mrf.mxu0
        %v421 = vadd.f32 %v299, %v420
        %422 = vmatmul.f32.gmra.mxu0 %v365
        %v423 = vpop.f32.mrf.mxu0
        %v424 = vadd.f32 %v304, %v423
        %425 = vmatmul.f32.gmra.mxu0 %v368
        %v426 = vpop.f32.mrf.mxu0
        %v427 = vadd.f32 %v309, %v426
        %428 = vmatmul.f32.gmra.mxu0 %v371
        %v429 = vpop.f32.mrf.mxu0
        %v430 = vadd.f32 %v314, %v429
        %431 = vmatmul.f32.gmra.mxu0 %v374
        %v432 = vpop.f32.mrf.mxu0
        %v433 = vadd.f32 %v319, %v432
        %434 = vmatmul.f32.gmra.mxu0 %v377
        %v435 = vpop.f32.mrf.mxu0
        %v436 = vadd.f32 %v324, %v435
        %437 = vmatmul.f32.gmra.mxu0 %v380
        %v438 = vpop.f32.mrf.mxu0
        %v439 = vadd.f32 %v329, %v438
        %440 = vmatmul.f32.gmra.mxu0 %v383
        %v441 = vpop.f32.mrf.mxu0
        %v442 = vadd.f32 %v334, %v441
        %443 = vmatmul.f32.gmra.mxu0 %v386
        %v444 = vpop.f32.mrf.mxu0
        %v445 = vadd.f32 %v339, %v444
        %446 = vmatmul.f32.gmra.mxu0 %v389
        %v447 = vpop.f32.mrf.mxu0
        %v448 = vadd.f32 %v344, %v447
        %449 = vmatmul.f32.gmra.mxu0 %v392
        %v450 = vpop.f32.mrf.mxu0
        %v451 = vadd.f32 %v349, %v450
        %452 = vdwg.mxu0
        %v453 = vmax.f32 %v412, 0.0
        %v454 = vmax.f32 %v415, 0.0
        %v455 = vmax.f32 %v418, 0.0
        %v456 = vmax.f32 %v421, 0.0
        %v457 = vmax.f32 %v424, 0.0
        %v458 = vmax.f32 %v427, 0.0
        %v459 = vmax.f32 %v430, 0.0
        %v460 = vmax.f32 %v433, 0.0
        %v461 = vmax.f32 %v436, 0.0
        %v462 = vmax.f32 %v439, 0.0
        %v463 = vmax.f32 %v442, 0.0
        %v464 = vmax.f32 %v445, 0.0
        %v465 = vmax.f32 %v448, 0.0
        %v466 = vmax.f32 %v451, 0.0
        %vm467 = vcmask 130048
        %468 = vst.msk [vmem:[#allocation2] sm:$0xff] %vm467, %v453
        %469 = vst.msk [vmem:[#allocation2 + $0x8] sm:$0xff] %vm467, %v454
        %470 = vst.msk [vmem:[#allocation2 + $0x10] sm:$0xff] %vm467, %v455
        %471 = vst.msk [vmem:[#allocation2 + $0x18] sm:$0xff] %vm467, %v456
        %472 = vst.msk [vmem:[#allocation2 + $0x20] sm:$0xff] %vm467, %v457
        %473 = vst.msk [vmem:[#allocation2 + $0x28] sm:$0xff] %vm467, %v458
        %474 = vst.msk [vmem:[#allocation2 + $0x30] sm:$0xff] %vm467, %v459
        %475 = vst.msk [vmem:[#allocation2 + $0x38] sm:$0xff] %vm467, %v460
        %476 = vst.msk [vmem:[#allocation2 + $0x40] sm:$0xff] %vm467, %v461
        %477 = vst.msk [vmem:[#allocation2 + $0x48] sm:$0xff] %vm467, %v462
        %478 = vst.msk [vmem:[#allocation2 + $0x50] sm:$0xff] %vm467, %v463
        %479 = vst.msk [vmem:[#allocation2 + $0x58] sm:$0xff] %vm467, %v464
        %480 = vst.msk [vmem:[#allocation2 + $0x60] sm:$0xff] %vm467, %v465
        %481 = vst.msk [vmem:[#allocation2 + $0x68] sm:$0xff] %vm467, %v466
      $region44: #{tpu_custom_call.1} parent=39 // pred_fallthru
        _
      %v482 = vld [vmem:[%s236] sm:$0xff]
      %v483 = vld [vmem:[%s236 + $0x8] sm:$0xff]
      %v484 = vld [vmem:[%s236 + $0x10] sm:$0xff]
      %v485 = vld [vmem:[%s236 + $0x18] sm:$0xff]
      %v486 = vld [vmem:[%s1] sm:$0xff]
      %v487 = vld [vmem:[%s1 + $0x8] sm:$0xff]
      %v488 = vld [vmem:[%s1 + $0x10] sm:$0xff]
      %v489 = vld [vmem:[%s1 + $0x18] sm:$0xff]
      %v490 = vld [vmem:[%s1 + $0x20] sm:$0xff]
      %v491 = vld [vmem:[%s1 + $0x28] sm:$0xff]
      %v492 = vld [vmem:[%s1 + $0x30] sm:$0xff]
      %v493 = vld [vmem:[%s4] sm:$0xff]
      %v494 = vld [vmem:[%s4 + $0x8] sm:$0xff]
      %v495 = vld [vmem:[%s4 + $0x10] sm:$0xff]
      %v496 = vld [vmem:[%s4 + $0x18] sm:$0xff]
      %v497 = vld [vmem:[%s4 + $0x20] sm:$0xff]
      %v498 = vld [vmem:[%s4 + $0x28] sm:$0xff]
      %v499 = vld [vmem:[%s4 + $0x30] sm:$0xff]
      %501 = vset.pattern.permute.xlu0 0
      %502 = vperm.xlu0 %501, %v493
      %v503 = vpop.permute.xlu0 %502
      %506 = vset.pattern.permute.xlu0 0
      %507 = vperm.xlu0 %506, %v494
      %v508 = vpop.permute.xlu0 %507
      %511 = vset.pattern.permute.xlu0 0
      %512 = vperm.xlu0 %511, %v495
      %v513 = vpop.permute.xlu0 %512
      %516 = vset.pattern.permute.xlu0 0
      %517 = vperm.xlu0 %516, %v496
      %v518 = vpop.permute.xlu0 %517
      %521 = vset.pattern.permute.xlu0 0
      %522 = vperm.xlu0 %521, %v497
      %v523 = vpop.permute.xlu0 %522
      %526 = vset.pattern.permute.xlu0 0
      %527 = vperm.xlu0 %526, %v498
      %v528 = vpop.permute.xlu0 %527
      %531 = vset.pattern.permute.xlu0 0
      %532 = vperm.xlu0 %531, %v499
      %v533 = vpop.permute.xlu0 %532
      %vm535 = vcmask 261120
      %v537 = vsel %vm535, %v486, 0
      %v540 = vsel %vm535, %v487, 0
      %v543 = vsel %vm535, %v488, 0
      %v546 = vsel %vm535, %v489, 0
      %v549 = vsel %vm535, %v490, 0
      %v552 = vsel %vm535, %v491, 0
      %v555 = vsel %vm535, %v492, 0
      %557 = vmatpush.msra.mxu0 0.0
      %558 = vmatpush.msra.mxu0 0.0
      %559 = vmatpush.msra.mxu0 0.0
      %560 = vmatpush.msra.mxu0 0.0
      %561 = vmatpush.msra.mxu0 0.0
      %562 = vmatpush.msra.mxu0 0.0
      %563 = vmatpush.msra.mxu0 0.0
      %564 = vmatpush.msra.mxu0 0.0
      %565 = vmatpush.msra.mxu0 0.0
      %566 = vmatpush.msra.mxu0 0.0
      %567 = vmatpush.msra.mxu0 0.0
      %568 = vmatpush.msra.mxu0 0.0
      %569 = vmatpush.msra.mxu0 %v485
      %570 = vmatpush.msra.mxu0 %v484
      %571 = vmatpush.msra.mxu0 %v483
      %572 = vmatpush.msra.mxu0 %v482
      %573 = vmatmul.f32.gmra.mxu0 %v537
      %v574 = vpop.f32.mrf.mxu0
      %v575 = vadd.f32 %v503, %v574
      %576 = vmatmul.f32.gmra.mxu0 %v540
      %v577 = vpop.f32.mrf.mxu0
      %v578 = vadd.f32 %v508, %v577
      %579 = vmatmul.f32.gmra.mxu0 %v543
      %v580 = vpop.f32.mrf.mxu0
      %v581 = vadd.f32 %v513, %v580
      %582 = vmatmul.f32.gmra.mxu0 %v546
      %v583 = vpop.f32.mrf.mxu0
      %v584 = vadd.f32 %v518, %v583
      %585 = vmatmul.f32.gmra.mxu0 %v549
      %v586 = vpop.f32.mrf.mxu0
      %v587 = vadd.f32 %v523, %v586
      %588 = vmatmul.f32.gmra.mxu0 %v552
      %v589 = vpop.f32.mrf.mxu0
      %v590 = vadd.f32 %v528, %v589
      %591 = vmatmul.f32.gmra.mxu0 %v555
      %v592 = vpop.f32.mrf.mxu0
      %v593 = vadd.f32 %v533, %v592
      %594 = vdwg.mxu0
      %v595 = vmax.f32 %v575, 0.0
      %v596 = vmax.f32 %v578, 0.0
      %v597 = vmax.f32 %v581, 0.0
      %v598 = vmax.f32 %v584, 0.0
      %v599 = vmax.f32 %v587, 0.0
      %v600 = vmax.f32 %v590, 0.0
      %v601 = vmax.f32 %v593, 0.0
      %v602 = vld [vmem:[#allocation2] sm:$0xff]
      %v603 = vld [vmem:[#allocation2 + $0x8] sm:$0xff]
      %v604 = vld [vmem:[#allocation2 + $0x10] sm:$0xff]
      %v605 = vld [vmem:[#allocation2 + $0x18] sm:$0xff]
      %v606 = vld [vmem:[#allocation2 + $0x20] sm:$0xff]
      %v607 = vld [vmem:[#allocation2 + $0x28] sm:$0xff]
      %v608 = vld [vmem:[#allocation2 + $0x30] sm:$0xff]
      %v609 = vld [vmem:[#allocation2 + $0x38] sm:$0xff]
      %v610 = vld [vmem:[#allocation2 + $0x40] sm:$0xff]
      %v611 = vld [vmem:[#allocation2 + $0x48] sm:$0xff]
      %v612 = vld [vmem:[#allocation2 + $0x50] sm:$0xff]
      %v613 = vld [vmem:[#allocation2 + $0x58] sm:$0xff]
      %v614 = vld [vmem:[#allocation2 + $0x60] sm:$0xff]
      %v615 = vld [vmem:[#allocation2 + $0x68] sm:$0xff]
      %616 = vxpose.xlu0.b32.start [1/16] %v595, 128
      %617 = vxpose.xlu0.b32.cont [2/16] 0.0, 128
      %618 = vxpose.xlu0.b32.cont [3/16] 0.0, 128
      %619 = vxpose.xlu0.b32.cont [4/16] 0.0, 128
      %620 = vxpose.xlu0.b32.cont [5/16] 0.0, 128
      %621 = vxpose.xlu0.b32.cont [6/16] 0.0, 128
      %622 = vxpose.xlu0.b32.cont [7/16] 0.0, 128
      %623 = vxpose.xlu0.b32.cont [8/16] 0.0, 128
      %624 = vxpose.xlu0.b32.cont [9/16] 0.0, 128
      %625 = vxpose.xlu0.b32.cont [10/16] 0.0, 128
      %626 = vxpose.xlu0.b32.cont [11/16] 0.0, 128
      %627 = vxpose.xlu0.b32.cont [12/16] 0.0, 128
      %628 = vxpose.xlu0.b32.cont [13/16] 0.0, 128
      %629 = vxpose.xlu0.b32.cont [14/16] 0.0, 128
      %630 = vxpose.xlu0.b32.cont [15/16] 0.0, 128
      %631 = vxpose.xlu0.b32.end [16/16] 0.0, 128
      %v632 = vpop.trf.xlu0
      %v633 = vpop.trf.xlu0
      %v634 = vpop.trf.xlu0
      %v635 = vpop.trf.xlu0
      %v636 = vpop.trf.xlu0
      %v637 = vpop.trf.xlu0
      %v638 = vpop.trf.xlu0
      %v639 = vpop.trf.xlu0
      %v640 = vpop.trf.xlu0
      %v641 = vpop.trf.xlu0
      %v642 = vpop.trf.xlu0
      %v643 = vpop.trf.xlu0
      %v644 = vpop.trf.xlu0
      %v645 = vpop.trf.xlu0
      %v646 = vpop.trf.xlu0
      %v647 = vpop.trf.xlu0
      %vm648 = vcmask 64512
      %v650 = vsel %vm648, %v632, 0
      %v653 = vsel %vm648, %v633, 0
      %655 = vmatpush.msra.mxu0 0.0
      %656 = vmatpush.msra.mxu0 0.0
      %657 = vmatpush.msra.mxu0 0.0
      %658 = vmatpush.msra.mxu0 0.0
      %659 = vmatpush.msra.mxu0 0.0
      %660 = vmatpush.msra.mxu0 0.0
      %661 = vmatpush.msra.mxu0 0.0
      %662 = vmatpush.msra.mxu0 0.0
      %663 = vmatpush.msra.mxu0 0.0
      %664 = vmatpush.msra.mxu0 0.0
      %665 = vmatpush.msra.mxu0 0.0
      %666 = vmatpush.msra.mxu0 0.0
      %667 = vmatpush.msra.mxu0 0.0
      %668 = vmatpush.msra.mxu0 0.0
      %669 = vmatpush.msra.mxu0 0.0
      %670 = vmatpush.msra.mxu0 %v602
      %671 = vmatmul.f32.gmra.mxu0 %v650
      %v672 = vpop.f32.mrf.mxu0
      %v673 = vadd.f32 0.0, %v672
      %674 = vmatmul.f32.gmra.mxu0 %v653
      %v675 = vpop.f32.mrf.mxu0
      %v676 = vadd.f32 0.0, %v675
      %677 = vdwg.mxu0
      %678 = vxpose.xlu0.b32.start [1/16] %v596, 128
      %679 = vxpose.xlu0.b32.cont [2/16] 0.0, 128
      %680 = vxpose.xlu0.b32.cont [3/16] 0.0, 128
      %681 = vxpose.xlu0.b32.cont [4/16] 0.0, 128
      %682 = vxpose.xlu0.b32.cont [5/16] 0.0, 128
      %683 = vxpose.xlu0.b32.cont [6/16] 0.0, 128
      %684 = vxpose.xlu0.b32.cont [7/16] 0.0, 128
      %685 = vxpose.xlu0.b32.cont [8/16] 0.0, 128
      %686 = vxpose.xlu0.b32.cont [9/16] 0.0, 128
      %687 = vxpose.xlu0.b32.cont [10/16] 0.0, 128
      %688 = vxpose.xlu0.b32.cont [11/16] 0.0, 128
      %689 = vxpose.xlu0.b32.cont [12/16] 0.0, 128
      %690 = vxpose.xlu0.b32.cont [13/16] 0.0, 128
      %691 = vxpose.xlu0.b32.cont [14/16] 0.0, 128
      %692 = vxpose.xlu0.b32.cont [15/16] 0.0, 128
      %693 = vxpose.xlu0.b32.end [16/16] 0.0, 128
      %v694 = vpop.trf.xlu0
      %v695 = vpop.trf.xlu0
      %v696 = vpop.trf.xlu0
      %v697 = vpop.trf.xlu0
      %v698 = vpop.trf.xlu0
      %v699 = vpop.trf.xlu0
      %v700 = vpop.trf.xlu0
      %v701 = vpop.trf.xlu0
      %v702 = vpop.trf.xlu0
      %v703 = vpop.trf.xlu0
      %v704 = vpop.trf.xlu0
      %v705 = vpop.trf.xlu0
      %v706 = vpop.trf.xlu0
      %v707 = vpop.trf.xlu0
      %v708 = vpop.trf.xlu0
      %v709 = vpop.trf.xlu0
      %v711 = vsel %vm648, %v694, 0
      %v714 = vsel %vm648, %v695, 0
      %716 = vmatpush.msra.mxu0 0.0
      %717 = vmatpush.msra.mxu0 0.0
      %718 = vmatpush.msra.mxu0 0.0
      %719 = vmatpush.msra.mxu0 0.0
      %720 = vmatpush.msra.mxu0 0.0
      %721 = vmatpush.msra.mxu0 0.0
      %722 = vmatpush.msra.mxu0 0.0
      %723 = vmatpush.msra.mxu0 0.0
      %724 = vmatpush.msra.mxu0 0.0
      %725 = vmatpush.msra.mxu0 0.0
      %726 = vmatpush.msra.mxu0 0.0
      %727 = vmatpush.msra.mxu0 0.0
      %728 = vmatpush.msra.mxu0 0.0
      %729 = vmatpush.msra.mxu0 0.0
      %730 = vmatpush.msra.mxu0 0.0
      %731 = vmatpush.msra.mxu0 %v603
      %732 = vmatmul.f32.gmra.mxu0 %v711
      %v733 = vpop.f32.mrf.mxu0
      %v734 = vadd.f32 0.0, %v733
      %735 = vmatmul.f32.gmra.mxu0 %v714
      %v736 = vpop.f32.mrf.mxu0
      %v737 = vadd.f32 0.0, %v736
      %738 = vdwg.mxu0
      %739 = vxpose.xlu0.b32.start [1/16] %v597, 128
      %740 = vxpose.xlu0.b32.cont [2/16] 0.0, 128
      %741 = vxpose.xlu0.b32.cont [3/16] 0.0, 128
      %742 = vxpose.xlu0.b32.cont [4/16] 0.0, 128
      %743 = vxpose.xlu0.b32.cont [5/16] 0.0, 128
      %744 = vxpose.xlu0.b32.cont [6/16] 0.0, 128
      %745 = vxpose.xlu0.b32.cont [7/16] 0.0, 128
      %746 = vxpose.xlu0.b32.cont [8/16] 0.0, 128
      %747 = vxpose.xlu0.b32.cont [9/16] 0.0, 128
      %748 = vxpose.xlu0.b32.cont [10/16] 0.0, 128
      %749 = vxpose.xlu0.b32.cont [11/16] 0.0, 128
      %750 = vxpose.xlu0.b32.cont [12/16] 0.0, 128
      %751 = vxpose.xlu0.b32.cont [13/16] 0.0, 128
      %752 = vxpose.xlu0.b32.cont [14/16] 0.0, 128
      %753 = vxpose.xlu0.b32.cont [15/16] 0.0, 128
      %754 = vxpose.xlu0.b32.end [16/16] 0.0, 128
      %v755 = vpop.trf.xlu0
      %v756 = vpop.trf.xlu0
      %v757 = vpop.trf.xlu0
      %v758 = vpop.trf.xlu0
      %v759 = vpop.trf.xlu0
      %v760 = vpop.trf.xlu0
      %v761 = vpop.trf.xlu0
      %v762 = vpop.trf.xlu0
      %v763 = vpop.trf.xlu0
      %v764 = vpop.trf.xlu0
      %v765 = vpop.trf.xlu0
      %v766 = vpop.trf.xlu0
      %v767 = vpop.trf.xlu0
      %v768 = vpop.trf.xlu0
      %v769 = vpop.trf.xlu0
      %v770 = vpop.trf.xlu0
      %v772 = vsel %vm648, %v755, 0
      %v775 = vsel %vm648, %v756, 0
      %777 = vmatpush.msra.mxu0 0.0
      %778 = vmatpush.msra.mxu0 0.0
      %779 = vmatpush.msra.mxu0 0.0
      %780 = vmatpush.msra.mxu0 0.0
      %781 = vmatpush.msra.mxu0 0.0
      %782 = vmatpush.msra.mxu0 0.0
      %783 = vmatpush.msra.mxu0 0.0
      %784 = vmatpush.msra.mxu0 0.0
      %785 = vmatpush.msra.mxu0 0.0
      %786 = vmatpush.msra.mxu0 0.0
      %787 = vmatpush.msra.mxu0 0.0
      %788 = vmatpush.msra.mxu0 0.0
      %789 = vmatpush.msra.mxu0 0.0
      %790 = vmatpush.msra.mxu0 0.0
      %791 = vmatpush.msra.mxu0 0.0
      %792 = vmatpush.msra.mxu0 %v604
      %793 = vmatmul.f32.gmra.mxu0 %v772
      %v794 = vpop.f32.mrf.mxu0
      %v795 = vadd.f32 0.0, %v794
      %796 = vmatmul.f32.gmra.mxu0 %v775
      %v797 = vpop.f32.mrf.mxu0
      %v798 = vadd.f32 0.0, %v797
      %799 = vdwg.mxu0
      %800 = vxpose.xlu0.b32.start [1/16] %v598, 128
      %801 = vxpose.xlu0.b32.cont [2/16] 0.0, 128
      %802 = vxpose.xlu0.b32.cont [3/16] 0.0, 128
      %803 = vxpose.xlu0.b32.cont [4/16] 0.0, 128
      %804 = vxpose.xlu0.b32.cont [5/16] 0.0, 128
      %805 = vxpose.xlu0.b32.cont [6/16] 0.0, 128
      %806 = vxpose.xlu0.b32.cont [7/16] 0.0, 128
      %807 = vxpose.xlu0.b32.cont [8/16] 0.0, 128
      %808 = vxpose.xlu0.b32.cont [9/16] 0.0, 128
      %809 = vxpose.xlu0.b32.cont [10/16] 0.0, 128
      %810 = vxpose.xlu0.b32.cont [11/16] 0.0, 128
      %811 = vxpose.xlu0.b32.cont [12/16] 0.0, 128
      %812 = vxpose.xlu0.b32.cont [13/16] 0.0, 128
      %813 = vxpose.xlu0.b32.cont [14/16] 0.0, 128
      %814 = vxpose.xlu0.b32.cont [15/16] 0.0, 128
      %815 = vxpose.xlu0.b32.end [16/16] 0.0, 128
      %v816 = vpop.trf.xlu0
      %v817 = vpop.trf.xlu0
      %v818 = vpop.trf.xlu0
      %v819 = vpop.trf.xlu0
      %v820 = vpop.trf.xlu0
      %v821 = vpop.trf.xlu0
      %v822 = vpop.trf.xlu0
      %v823 = vpop.trf.xlu0
      %v824 = vpop.trf.xlu0
      %v825 = vpop.trf.xlu0
      %v826 = vpop.trf.xlu0
      %v827 = vpop.trf.xlu0
      %v828 = vpop.trf.xlu0
      %v829 = vpop.trf.xlu0
      %v830 = vpop.trf.xlu0
      %v831 = vpop.trf.xlu0
      %v833 = vsel %vm648, %v816, 0
      %v836 = vsel %vm648, %v817, 0
      %838 = vmatpush.msra.mxu0 0.0
      %839 = vmatpush.msra.mxu0 0.0
      %840 = vmatpush.msra.mxu0 0.0
      %841 = vmatpush.msra.mxu0 0.0
      %842 = vmatpush.msra.mxu0 0.0
      %843 = vmatpush.msra.mxu0 0.0
      %844 = vmatpush.msra.mxu0 0.0
      %845 = vmatpush.msra.mxu0 0.0
      %846 = vmatpush.msra.mxu0 0.0
      %847 = vmatpush.msra.mxu0 0.0
      %848 = vmatpush.msra.mxu0 0.0
      %849 = vmatpush.msra.mxu0 0.0
      %850 = vmatpush.msra.mxu0 0.0
      %851 = vmatpush.msra.mxu0 0.0
      %852 = vmatpush.msra.mxu0 0.0
      %853 = vmatpush.msra.mxu0 %v605
      %854 = vmatmul.f32.gmra.mxu0 %v833
      %v855 = vpop.f32.mrf.mxu0
      %v856 = vadd.f32 0.0, %v855
      %857 = vmatmul.f32.gmra.mxu0 %v836
      %v858 = vpop.f32.mrf.mxu0
      %v859 = vadd.f32 0.0, %v858
      %860 = vdwg.mxu0
      %861 = vxpose.xlu0.b32.start [1/16] %v599, 128
      %862 = vxpose.xlu0.b32.cont [2/16] 0.0, 128
      %863 = vxpose.xlu0.b32.cont [3/16] 0.0, 128
      %864 = vxpose.xlu0.b32.cont [4/16] 0.0, 128
      %865 = vxpose.xlu0.b32.cont [5/16] 0.0, 128
      %866 = vxpose.xlu0.b32.cont [6/16] 0.0, 128
      %867 = vxpose.xlu0.b32.cont [7/16] 0.0, 128
      %868 = vxpose.xlu0.b32.cont [8/16] 0.0, 128
      %869 = vxpose.xlu0.b32.cont [9/16] 0.0, 128
      %870 = vxpose.xlu0.b32.cont [10/16] 0.0, 128
      %871 = vxpose.xlu0.b32.cont [11/16] 0.0, 128
      %872 = vxpose.xlu0.b32.cont [12/16] 0.0, 128
      %873 = vxpose.xlu0.b32.cont [13/16] 0.0, 128
      %874 = vxpose.xlu0.b32.cont [14/16] 0.0, 128
      %875 = vxpose.xlu0.b32.cont [15/16] 0.0, 128
      %876 = vxpose.xlu0.b32.end [16/16] 0.0, 128
      %v877 = vpop.trf.xlu0
      %v878 = vpop.trf.xlu0
      %v879 = vpop.trf.xlu0
      %v880 = vpop.trf.xlu0
      %v881 = vpop.trf.xlu0
      %v882 = vpop.trf.xlu0
      %v883 = vpop.trf.xlu0
      %v884 = vpop.trf.xlu0
      %v885 = vpop.trf.xlu0
      %v886 = vpop.trf.xlu0
      %v887 = vpop.trf.xlu0
      %v888 = vpop.trf.xlu0
      %v889 = vpop.trf.xlu0
      %v890 = vpop.trf.xlu0
      %v891 = vpop.trf.xlu0
      %v892 = vpop.trf.xlu0
      %v894 = vsel %vm648, %v877, 0
      %v897 = vsel %vm648, %v878, 0
      %899 = vmatpush.msra.mxu0 0.0
      %900 = vmatpush.msra.mxu0 0.0
      %901 = vmatpush.msra.mxu0 0.0
      %902 = vmatpush.msra.mxu0 0.0
      %903 = vmatpush.msra.mxu0 0.0
      %904 = vmatpush.msra.mxu0 0.0
      %905 = vmatpush.msra.mxu0 0.0
      %906 = vmatpush.msra.mxu0 0.0
      %907 = vmatpush.msra.mxu0 0.0
      %908 = vmatpush.msra.mxu0 0.0
      %909 = vmatpush.msra.mxu0 0.0
      %910 = vmatpush.msra.mxu0 0.0
      %911 = vmatpush.msra.mxu0 0.0
      %912 = vmatpush.msra.mxu0 0.0
      %913 = vmatpush.msra.mxu0 0.0
      %914 = vmatpush.msra.mxu0 %v606
      %915 = vmatmul.f32.gmra.mxu0 %v894
      %v916 = vpop.f32.mrf.mxu0
      %v917 = vadd.f32 0.0, %v916
      %918 = vmatmul.f32.gmra.mxu0 %v897
      %v919 = vpop.f32.mrf.mxu0
      %v920 = vadd.f32 0.0, %v919
      %921 = vdwg.mxu0
      %922 = vxpose.xlu0.b32.start [1/16] %v600, 128
      %923 = vxpose.xlu0.b32.cont [2/16] 0.0, 128
      %924 = vxpose.xlu0.b32.cont [3/16] 0.0, 128
      %925 = vxpose.xlu0.b32.cont [4/16] 0.0, 128
      %926 = vxpose.xlu0.b32.cont [5/16] 0.0, 128
      %927 = vxpose.xlu0.b32.cont [6/16] 0.0, 128
      %928 = vxpose.xlu0.b32.cont [7/16] 0.0, 128
      %929 = vxpose.xlu0.b32.cont [8/16] 0.0, 128
      %930 = vxpose.xlu0.b32.cont [9/16] 0.0, 128
      %931 = vxpose.xlu0.b32.cont [10/16] 0.0, 128
      %932 = vxpose.xlu0.b32.cont [11/16] 0.0, 128
      %933 = vxpose.xlu0.b32.cont [12/16] 0.0, 128
      %934 = vxpose.xlu0.b32.cont [13/16] 0.0, 128
      %935 = vxpose.xlu0.b32.cont [14/16] 0.0, 128
      %936 = vxpose.xlu0.b32.cont [15/16] 0.0, 128
      %937 = vxpose.xlu0.b32.end [16/16] 0.0, 128
      %v938 = vpop.trf.xlu0
      %v939 = vpop.trf.xlu0
      %v940 = vpop.trf.xlu0
      %v941 = vpop.trf.xlu0
      %v942 = vpop.trf.xlu0
      %v943 = vpop.trf.xlu0
      %v944 = vpop.trf.xlu0
      %v945 = vpop.trf.xlu0
      %v946 = vpop.trf.xlu0
      %v947 = vpop.trf.xlu0
      %v948 = vpop.trf.xlu0
      %v949 = vpop.trf.xlu0
      %v950 = vpop.trf.xlu0
      %v951 = vpop.trf.xlu0
      %v952 = vpop.trf.xlu0
      %v953 = vpop.trf.xlu0
      %v955 = vsel %vm648, %v938, 0
      %v958 = vsel %vm648, %v939, 0
      %960 = vmatpush.msra.mxu0 0.0
      %961 = vmatpush.msra.mxu0 0.0
      %962 = vmatpush.msra.mxu0 0.0
      %963 = vmatpush.msra.mxu0 0.0
      %964 = vmatpush.msra.mxu0 0.0
      %965 = vmatpush.msra.mxu0 0.0
      %966 = vmatpush.msra.mxu0 0.0
      %967 = vmatpush.msra.mxu0 0.0
      %968 = vmatpush.msra.mxu0 0.0
      %969 = vmatpush.msra.mxu0 0.0
      %970 = vmatpush.msra.mxu0 0.0
      %971 = vmatpush.msra.mxu0 0.0
      %972 = vmatpush.msra.mxu0 0.0
      %973 = vmatpush.msra.mxu0 0.0
      %974 = vmatpush.msra.mxu0 0.0
      %975 = vmatpush.msra.mxu0 %v607
      %976 = vmatmul.f32.gmra.mxu0 %v955
      %v977 = vpop.f32.mrf.mxu0
      %v978 = vadd.f32 0.0, %v977
      %979 = vmatmul.f32.gmra.mxu0 %v958
      %v980 = vpop.f32.mrf.mxu0
      %v981 = vadd.f32 0.0, %v980
      %982 = vdwg.mxu0
      %983 = vxpose.xlu0.b32.start [1/16] %v601, 128
      %984 = vxpose.xlu0.b32.cont [2/16] 0.0, 128
      %985 = vxpose.xlu0.b32.cont [3/16] 0.0, 128
      %986 = vxpose.xlu0.b32.cont [4/16] 0.0, 128
      %987 = vxpose.xlu0.b32.cont [5/16] 0.0, 128
      %988 = vxpose.xlu0.b32.cont [6/16] 0.0, 128
      %989 = vxpose.xlu0.b32.cont [7/16] 0.0, 128
      %990 = vxpose.xlu0.b32.cont [8/16] 0.0, 128
      %991 = vxpose.xlu0.b32.cont [9/16] 0.0, 128
      %992 = vxpose.xlu0.b32.cont [10/16] 0.0, 128
      %993 = vxpose.xlu0.b32.cont [11/16] 0.0, 128
      %994 = vxpose.xlu0.b32.cont [12/16] 0.0, 128
      %995 = vxpose.xlu0.b32.cont [13/16] 0.0, 128
      %996 = vxpose.xlu0.b32.cont [14/16] 0.0, 128
      %997 = vxpose.xlu0.b32.cont [15/16] 0.0, 128
      %998 = vxpose.xlu0.b32.end [16/16] 0.0, 128
      %v999 = vpop.trf.xlu0
      %v1000 = vpop.trf.xlu0
      %v1001 = vpop.trf.xlu0
      %v1002 = vpop.trf.xlu0
      %v1003 = vpop.trf.xlu0
      %v1004 = vpop.trf.xlu0
      %v1005 = vpop.trf.xlu0
      %v1006 = vpop.trf.xlu0
      %v1007 = vpop.trf.xlu0
      %v1008 = vpop.trf.xlu0
      %v1009 = vpop.trf.xlu0
      %v1010 = vpop.trf.xlu0
      %v1011 = vpop.trf.xlu0
      %v1012 = vpop.trf.xlu0
      %v1013 = vpop.trf.xlu0
      %v1014 = vpop.trf.xlu0
      %v1016 = vsel %vm648, %v999, 0
      %v1019 = vsel %vm648, %v1000, 0
      %1021 = vmatpush.msra.mxu0 0.0
      %1022 = vmatpush.msra.mxu0 0.0
      %1023 = vmatpush.msra.mxu0 0.0
      %1024 = vmatpush.msra.mxu0 0.0
      %1025 = vmatpush.msra.mxu0 0.0
      %1026 = vmatpush.msra.mxu0 0.0
      %1027 = vmatpush.msra.mxu0 0.0
      %1028 = vmatpush.msra.mxu0 0.0
      %1029 = vmatpush.msra.mxu0 0.0
      %1030 = vmatpush.msra.mxu0 0.0
      %1031 = vmatpush.msra.mxu0 0.0
      %1032 = vmatpush.msra.mxu0 0.0
      %1033 = vmatpush.msra.mxu0 0.0
      %1034 = vmatpush.msra.mxu0 0.0
      %1035 = vmatpush.msra.mxu0 0.0
      %1036 = vmatpush.msra.mxu0 %v608
      %1037 = vmatmul.f32.gmra.mxu0 %v1016
      %v1038 = vpop.f32.mrf.mxu0
      %v1039 = vadd.f32 0.0, %v1038
      %1040 = vmatmul.f32.gmra.mxu0 %v1019
      %v1041 = vpop.f32.mrf.mxu0
      %v1042 = vadd.f32 0.0, %v1041
      %1043 = vdwg.mxu0
      %vm1044 = vcmask 130048
      %v1045 = vsel %vm1044, %v673, -inf
      %1046 = vmax.xlane.f32.xlu0 %v1045
      %v1047 = vpop.xlane.xlu0 %1046
      %v1048 = vsel %vm1044, %v676, -inf
      %1049 = vmax.xlane.f32.xlu0 %v1048
      %v1050 = vpop.xlane.xlu0 %1049
      %v1051 = vsel %vm1044, %v734, -inf
      %1052 = vmax.xlane.f32.xlu0 %v1051
      %v1053 = vpop.xlane.xlu0 %1052
      %v1054 = vsel %vm1044, %v737, -inf
      %1055 = vmax.xlane.f32.xlu0 %v1054
      %v1056 = vpop.xlane.xlu0 %1055
      %v1057 = vsel %vm1044, %v795, -inf
      %1058 = vmax.xlane.f32.xlu0 %v1057
      %v1059 = vpop.xlane.xlu0 %1058
      %v1060 = vsel %vm1044, %v798, -inf
      %1061 = vmax.xlane.f32.xlu0 %v1060
      %v1062 = vpop.xlane.xlu0 %1061
      %v1063 = vsel %vm1044, %v856, -inf
      %1064 = vmax.xlane.f32.xlu0 %v1063
      %v1065 = vpop.xlane.xlu0 %1064
      %v1066 = vsel %vm1044, %v859, -inf
      %1067 = vmax.xlane.f32.xlu0 %v1066
      %v1068 = vpop.xlane.xlu0 %1067
      %v1069 = vsel %vm1044, %v917, -inf
      %1070 = vmax.xlane.f32.xlu0 %v1069
      %v1071 = vpop.xlane.xlu0 %1070
      %v1072 = vsel %vm1044, %v920, -inf
      %1073 = vmax.xlane.f32.xlu0 %v1072
      %v1074 = vpop.xlane.xlu0 %1073
      %v1075 = vsel %vm1044, %v978, -inf
      %1076 = vmax.xlane.f32.xlu0 %v1075
      %v1077 = vpop.xlane.xlu0 %1076
      %v1078 = vsel %vm1044, %v981, -inf
      %1079 = vmax.xlane.f32.xlu0 %v1078
      %v1080 = vpop.xlane.xlu0 %1079
      %v1081 = vsel %vm1044, %v1039, -inf
      %1082 = vmax.xlane.f32.xlu0 %v1081
      %v1083 = vpop.xlane.xlu0 %1082
      %v1084 = vsel %vm1044, %v1042, -inf
      %1085 = vmax.xlane.f32.xlu0 %v1084
      %v1086 = vpop.xlane.xlu0 %1085
      %v1087 = vsub.f32 %v673, %v1047
      %v1088 = vsub.f32 %v676, %v1050
      %v1089 = vsub.f32 %v734, %v1053
      %v1090 = vsub.f32 %v737, %v1056
      %v1091 = vsub.f32 %v795, %v1059
      %v1092 = vsub.f32 %v798, %v1062
      %v1093 = vsub.f32 %v856, %v1065
      %v1094 = vsub.f32 %v859, %v1068
      %v1095 = vsub.f32 %v917, %v1071
      %v1096 = vsub.f32 %v920, %v1074
      %v1097 = vsub.f32 %v978, %v1077
      %v1098 = vsub.f32 %v981, %v1080
      %v1099 = vsub.f32 %v1039, %v1083
      %v1100 = vsub.f32 %v1042, %v1086
      %v1101 = vmul.f32 %v1087, 1.442695
      %v1102 = vpow.pop %v1101
      %v1103 = vmul.f32 %v1088, 1.442695
      %v1104 = vpow.pop %v1103
      %v1105 = vmul.f32 %v1089, 1.442695
      %v1106 = vpow.pop %v1105
      %v1107 = vmul.f32 %v1090, 1.442695
      %v1108 = vpow.pop %v1107
      %v1109 = vmul.f32 %v1091, 1.442695
      %v1110 = vpow.pop %v1109
      %v1111 = vmul.f32 %v1092, 1.442695
      %v1112 = vpow.pop %v1111
      %v1113 = vmul.f32 %v1093, 1.442695
      %v1114 = vpow.pop %v1113
      %v1115 = vmul.f32 %v1094, 1.442695
      %v1116 = vpow.pop %v1115
      %v1117 = vmul.f32 %v1095, 1.442695
      %v1118 = vpow.pop %v1117
      %v1119 = vmul.f32 %v1096, 1.442695
      %v1120 = vpow.pop %v1119
      %v1121 = vmul.f32 %v1097, 1.442695
      %v1122 = vpow.pop %v1121
      %v1123 = vmul.f32 %v1098, 1.442695
      %v1124 = vpow.pop %v1123
      %v1125 = vmul.f32 %v1099, 1.442695
      %v1126 = vpow.pop %v1125
      %v1127 = vmul.f32 %v1100, 1.442695
      %v1128 = vpow.pop %v1127
      %v1129 = vsel %vm1044, %v1102, 0.0
      %1130 = vadd.xlane.f32.xlu0 %v1129
      %v1131 = vpop.xlane.xlu0 %1130
      %v1132 = vsel %vm1044, %v1104, 0.0
      %1133 = vadd.xlane.f32.xlu0 %v1132
      %v1134 = vpop.xlane.xlu0 %1133
      %v1135 = vsel %vm1044, %v1106, 0.0
      %1136 = vadd.xlane.f32.xlu0 %v1135
      %v1137 = vpop.xlane.xlu0 %1136
      %v1138 = vsel %vm1044, %v1108, 0.0
      %1139 = vadd.xlane.f32.xlu0 %v1138
      %v1140 = vpop.xlane.xlu0 %1139
      %v1141 = vsel %vm1044, %v1110, 0.0
      %1142 = vadd.xlane.f32.xlu0 %v1141
      %v1143 = vpop.xlane.xlu0 %1142
      %v1144 = vsel %vm1044, %v1112, 0.0
      %1145 = vadd.xlane.f32.xlu0 %v1144
      %v1146 = vpop.xlane.xlu0 %1145
      %v1147 = vsel %vm1044, %v1114, 0.0
      %1148 = vadd.xlane.f32.xlu0 %v1147
      %v1149 = vpop.xlane.xlu0 %1148
      %v1150 = vsel %vm1044, %v1116, 0.0
      %1151 = vadd.xlane.f32.xlu0 %v1150
      %v1152 = vpop.xlane.xlu0 %1151
      %v1153 = vsel %vm1044, %v1118, 0.0
      %1154 = vadd.xlane.f32.xlu0 %v1153
      %v1155 = vpop.xlane.xlu0 %1154
      %v1156 = vsel %vm1044, %v1120, 0.0
      %1157 = vadd.xlane.f32.xlu0 %v1156
      %v1158 = vpop.xlane.xlu0 %1157
      %v1159 = vsel %vm1044, %v1122, 0.0
      %1160 = vadd.xlane.f32.xlu0 %v1159
      %v1161 = vpop.xlane.xlu0 %1160
      %v1162 = vsel %vm1044, %v1124, 0.0
      %1163 = vadd.xlane.f32.xlu0 %v1162
      %v1164 = vpop.xlane.xlu0 %1163
      %v1165 = vsel %vm1044, %v1126, 0.0
      %1166 = vadd.xlane.f32.xlu0 %v1165
      %v1167 = vpop.xlane.xlu0 %1166
      %v1168 = vsel %vm1044, %v1128, 0.0
      %1169 = vadd.xlane.f32.xlu0 %v1168
      %v1170 = vpop.xlane.xlu0 %1169
      %v1172 = vsel %vm1044, %v609, 0
      %v1175 = vsel %vm1044, %v1102, 0
      %v1178 = vsel %vm1044, %v1104, 0
      %1180 = vmatpush.xpose.msra.mxu0 0.0
      %1181 = vmatpush.xpose.msra.mxu0 0.0
      %1182 = vmatpush.xpose.msra.mxu0 0.0
      %1183 = vmatpush.xpose.msra.mxu0 0.0
      %1184 = vmatpush.xpose.msra.mxu0 0.0
      %1185 = vmatpush.xpose.msra.mxu0 0.0
      %1186 = vmatpush.xpose.msra.mxu0 0.0
      %1187 = vmatpush.xpose.msra.mxu0 0.0
      %1188 = vmatpush.xpose.msra.mxu0 0.0
      %1189 = vmatpush.xpose.msra.mxu0 0.0
      %1190 = vmatpush.xpose.msra.mxu0 0.0
      %1191 = vmatpush.xpose.msra.mxu0 0.0
      %1192 = vmatpush.xpose.msra.mxu0 0.0
      %1193 = vmatpush.xpose.msra.mxu0 0.0
      %1194 = vmatpush.xpose.msra.mxu0 %v1178
      %1195 = vmatpush.xpose.msra.mxu0 %v1175
      %1196 = vmatmul.f32.gmra.mxu0 %v1172
      %v1197 = vpop.f32.mrf.mxu0
      %v1198 = vadd.f32 0.0, %v1197
      %1199 = vdwg.mxu0
      %v1201 = vsel %vm1044, %v610, 0
      %v1204 = vsel %vm1044, %v1106, 0
      %v1207 = vsel %vm1044, %v1108, 0
      %1209 = vmatpush.xpose.msra.mxu0 0.0
      %1210 = vmatpush.xpose.msra.mxu0 0.0
      %1211 = vmatpush.xpose.msra.mxu0 0.0
      %1212 = vmatpush.xpose.msra.mxu0 0.0
      %1213 = vmatpush.xpose.msra.mxu0 0.0
      %1214 = vmatpush.xpose.msra.mxu0 0.0
      %1215 = vmatpush.xpose.msra.mxu0 0.0
      %1216 = vmatpush.xpose.msra.mxu0 0.0
      %1217 = vmatpush.xpose.msra.mxu0 0.0
      %1218 = vmatpush.xpose.msra.mxu0 0.0
      %1219 = vmatpush.xpose.msra.mxu0 0.0
      %1220 = vmatpush.xpose.msra.mxu0 0.0
      %1221 = vmatpush.xpose.msra.mxu0 0.0
      %1222 = vmatpush.xpose.msra.mxu0 0.0
      %1223 = vmatpush.xpose.msra.mxu0 %v1207
      %1224 = vmatpush.xpose.msra.mxu0 %v1204
      %1225 = vmatmul.f32.gmra.mxu0 %v1201
      %v1226 = vpop.f32.mrf.mxu0
      %v1227 = vadd.f32 0.0, %v1226
      %1228 = vdwg.mxu0
      %v1230 = vsel %vm1044, %v611, 0
      %v1233 = vsel %vm1044, %v1110, 0
      %v1236 = vsel %vm1044, %v1112, 0
      %1238 = vmatpush.xpose.msra.mxu0 0.0
      %1239 = vmatpush.xpose.msra.mxu0 0.0
      %1240 = vmatpush.xpose.msra.mxu0 0.0
      %1241 = vmatpush.xpose.msra.mxu0 0.0
      %1242 = vmatpush.xpose.msra.mxu0 0.0
      %1243 = vmatpush.xpose.msra.mxu0 0.0
      %1244 = vmatpush.xpose.msra.mxu0 0.0
      %1245 = vmatpush.xpose.msra.mxu0 0.0
      %1246 = vmatpush.xpose.msra.mxu0 0.0
      %1247 = vmatpush.xpose.msra.mxu0 0.0
      %1248 = vmatpush.xpose.msra.mxu0 0.0
      %1249 = vmatpush.xpose.msra.mxu0 0.0
      %1250 = vmatpush.xpose.msra.mxu0 0.0
      %1251 = vmatpush.xpose.msra.mxu0 0.0
      %1252 = vmatpush.xpose.msra.mxu0 %v1236
      %1253 = vmatpush.xpose.msra.mxu0 %v1233
      %1254 = vmatmul.f32.gmra.mxu0 %v1230
      %v1255 = vpop.f32.mrf.mxu0
      %v1256 = vadd.f32 0.0, %v1255
      %1257 = vdwg.mxu0
      %v1259 = vsel %vm1044, %v612, 0
      %v1262 = vsel %vm1044, %v1114, 0
      %v1265 = vsel %vm1044, %v1116, 0
      %1267 = vmatpush.xpose.msra.mxu0 0.0
      %1268 = vmatpush.xpose.msra.mxu0 0.0
      %1269 = vmatpush.xpose.msra.mxu0 0.0
      %1270 = vmatpush.xpose.msra.mxu0 0.0
      %1271 = vmatpush.xpose.msra.mxu0 0.0
      %1272 = vmatpush.xpose.msra.mxu0 0.0
      %1273 = vmatpush.xpose.msra.mxu0 0.0
      %1274 = vmatpush.xpose.msra.mxu0 0.0
      %1275 = vmatpush.xpose.msra.mxu0 0.0
      %1276 = vmatpush.xpose.msra.mxu0 0.0
      %1277 = vmatpush.xpose.msra.mxu0 0.0
      %1278 = vmatpush.xpose.msra.mxu0 0.0
      %1279 = vmatpush.xpose.msra.mxu0 0.0
      %1280 = vmatpush.xpose.msra.mxu0 0.0
      %1281 = vmatpush.xpose.msra.mxu0 %v1265
      %1282 = vmatpush.xpose.msra.mxu0 %v1262
      %1283 = vmatmul.f32.gmra.mxu0 %v1259
      %v1284 = vpop.f32.mrf.mxu0
      %v1285 = vadd.f32 0.0, %v1284
      %1286 = vdwg.mxu0
      %v1288 = vsel %vm1044, %v613, 0
      %v1291 = vsel %vm1044, %v1118, 0
      %v1294 = vsel %vm1044, %v1120, 0
      %1296 = vmatpush.xpose.msra.mxu0 0.0
      %1297 = vmatpush.xpose.msra.mxu0 0.0
      %1298 = vmatpush.xpose.msra.mxu0 0.0
      %1299 = vmatpush.xpose.msra.mxu0 0.0
      %1300 = vmatpush.xpose.msra.mxu0 0.0
      %1301 = vmatpush.xpose.msra.mxu0 0.0
      %1302 = vmatpush.xpose.msra.mxu0 0.0
      %1303 = vmatpush.xpose.msra.mxu0 0.0
      %1304 = vmatpush.xpose.msra.mxu0 0.0
      %1305 = vmatpush.xpose.msra.mxu0 0.0
      %1306 = vmatpush.xpose.msra.mxu0 0.0
      %1307 = vmatpush.xpose.msra.mxu0 0.0
      %1308 = vmatpush.xpose.msra.mxu0 0.0
      %1309 = vmatpush.xpose.msra.mxu0 0.0
      %1310 = vmatpush.xpose.msra.mxu0 %v1294
      %1311 = vmatpush.xpose.msra.mxu0 %v1291
      %1312 = vmatmul.f32.gmra.mxu0 %v1288
      %v1313 = vpop.f32.mrf.mxu0
      %v1314 = vadd.f32 0.0, %v1313
      %1315 = vdwg.mxu0
      %v1317 = vsel %vm1044, %v614, 0
      %v1320 = vsel %vm1044, %v1122, 0
      %v1323 = vsel %vm1044, %v1124, 0
      %1325 = vmatpush.xpose.msra.mxu0 0.0
      %1326 = vmatpush.xpose.msra.mxu0 0.0
      %1327 = vmatpush.xpose.msra.mxu0 0.0
      %1328 = vmatpush.xpose.msra.mxu0 0.0
      %1329 = vmatpush.xpose.msra.mxu0 0.0
      %1330 = vmatpush.xpose.msra.mxu0 0.0
      %1331 = vmatpush.xpose.msra.mxu0 0.0
      %1332 = vmatpush.xpose.msra.mxu0 0.0
      %1333 = vmatpush.xpose.msra.mxu0 0.0
      %1334 = vmatpush.xpose.msra.mxu0 0.0
      %1335 = vmatpush.xpose.msra.mxu0 0.0
      %1336 = vmatpush.xpose.msra.mxu0 0.0
      %1337 = vmatpush.xpose.msra.mxu0 0.0
      %1338 = vmatpush.xpose.msra.mxu0 0.0
      %1339 = vmatpush.xpose.msra.mxu0 %v1323
      %1340 = vmatpush.xpose.msra.mxu0 %v1320
      %1341 = vmatmul.f32.gmra.mxu0 %v1317
      %v1342 = vpop.f32.mrf.mxu0
      %v1343 = vadd.f32 0.0, %v1342
      %1344 = vdwg.mxu0
      %v1346 = vsel %vm1044, %v615, 0
      %v1349 = vsel %vm1044, %v1126, 0
      %v1352 = vsel %vm1044, %v1128, 0
      %1354 = vmatpush.xpose.msra.mxu0 0.0
      %1355 = vmatpush.xpose.msra.mxu0 0.0
      %1356 = vmatpush.xpose.msra.mxu0 0.0
      %1357 = vmatpush.xpose.msra.mxu0 0.0
      %1358 = vmatpush.xpose.msra.mxu0 0.0
      %1359 = vmatpush.xpose.msra.mxu0 0.0
      %1360 = vmatpush.xpose.msra.mxu0 0.0
      %1361 = vmatpush.xpose.msra.mxu0 0.0
      %1362 = vmatpush.xpose.msra.mxu0 0.0
      %1363 = vmatpush.xpose.msra.mxu0 0.0
      %1364 = vmatpush.xpose.msra.mxu0 0.0
      %1365 = vmatpush.xpose.msra.mxu0 0.0
      %1366 = vmatpush.xpose.msra.mxu0 0.0
      %1367 = vmatpush.xpose.msra.mxu0 0.0
      %1368 = vmatpush.xpose.msra.mxu0 %v1352
      %1369 = vmatpush.xpose.msra.mxu0 %v1349
      %1370 = vmatmul.f32.gmra.mxu0 %v1346
      %v1371 = vpop.f32.mrf.mxu0
      %v1372 = vadd.f32 0.0, %v1371
      %1373 = vdwg.mxu0
      %v1374 = vrcp.pop %v1131
      %v1375 = vmul.f32 %v1131, %v1374
      %v1376 = vsub.f32 1.0, %v1375
      %v1377 = vmul.f32 %v1374, %v1376
      %v1378 = vadd.f32 %v1374, %v1377
      %vm1379 = vweird.f32 %v1131
      %vm1380 = vweird.f32 %v1374
      %vm1381 = vmor %vm1379, %vm1380
      %v1382 = vsel %vm1381, %v1374, %v1378
      %v1383 = vand.u32 2147483647, %v1131
      %vm1384 = vcmp.eq.f32.partialorder %v1383, 8.507059e+37
      %v1385 = vand.u32 %v1131, 2147483648
      %v1386 = vor.u32 1.1754944e-38, %v1385
      %v1387 = vsel %vm1384, %v1386, %v1382
      %v1388 = vmul.f32 1.0, %v1387
      %v1389 = vrcp.pop %v1134
      %v1390 = vmul.f32 %v1134, %v1389
      %v1391 = vsub.f32 1.0, %v1390
      %v1392 = vmul.f32 %v1389, %v1391
      %v1393 = vadd.f32 %v1389, %v1392
      %vm1394 = vweird.f32 %v1134
      %vm1395 = vweird.f32 %v1389
      %vm1396 = vmor %vm1394, %vm1395
      %v1397 = vsel %vm1396, %v1389, %v1393
      %v1398 = vand.u32 2147483647, %v1134
      %vm1399 = vcmp.eq.f32.partialorder %v1398, 8.507059e+37
      %v1400 = vand.u32 %v1134, 2147483648
      %v1401 = vor.u32 1.1754944e-38, %v1400
      %v1402 = vsel %vm1399, %v1401, %v1397
      %v1403 = vmul.f32 1.0, %v1402
      %v1404 = vrcp.pop %v1137
      %v1405 = vmul.f32 %v1137, %v1404
      %v1406 = vsub.f32 1.0, %v1405
      %v1407 = vmul.f32 %v1404, %v1406
      %v1408 = vadd.f32 %v1404, %v1407
      %vm1409 = vweird.f32 %v1137
      %vm1410 = vweird.f32 %v1404
      %vm1411 = vmor %vm1409, %vm1410
      %v1412 = vsel %vm1411, %v1404, %v1408
      %v1413 = vand.u32 2147483647, %v1137
      %vm1414 = vcmp.eq.f32.partialorder %v1413, 8.507059e+37
      %v1415 = vand.u32 %v1137, 2147483648
      %v1416 = vor.u32 1.1754944e-38, %v1415
      %v1417 = vsel %vm1414, %v1416, %v1412
      %v1418 = vmul.f32 1.0, %v1417
      %v1419 = vrcp.pop %v1140
      %v1420 = vmul.f32 %v1140, %v1419
      %v1421 = vsub.f32 1.0, %v1420
      %v1422 = vmul.f32 %v1419, %v1421
      %v1423 = vadd.f32 %v1419, %v1422
      %vm1424 = vweird.f32 %v1140
      %vm1425 = vweird.f32 %v1419
      %vm1426 = vmor %vm1424, %vm1425
      %v1427 = vsel %vm1426, %v1419, %v1423
      %v1428 = vand.u32 2147483647, %v1140
      %vm1429 = vcmp.eq.f32.partialorder %v1428, 8.507059e+37
      %v1430 = vand.u32 %v1140, 2147483648
      %v1431 = vor.u32 1.1754944e-38, %v1430
      %v1432 = vsel %vm1429, %v1431, %v1427
      %v1433 = vmul.f32 1.0, %v1432
      %v1434 = vrcp.pop %v1143
      %v1435 = vmul.f32 %v1143, %v1434
      %v1436 = vsub.f32 1.0, %v1435
      %v1437 = vmul.f32 %v1434, %v1436
      %v1438 = vadd.f32 %v1434, %v1437
      %vm1439 = vweird.f32 %v1143
      %vm1440 = vweird.f32 %v1434
      %vm1441 = vmor %vm1439, %vm1440
      %v1442 = vsel %vm1441, %v1434, %v1438
      %v1443 = vand.u32 2147483647, %v1143
      %vm1444 = vcmp.eq.f32.partialorder %v1443, 8.507059e+37
      %v1445 = vand.u32 %v1143, 2147483648
      %v1446 = vor.u32 1.1754944e-38, %v1445
      %v1447 = vsel %vm1444, %v1446, %v1442
      %v1448 = vmul.f32 1.0, %v1447
      %v1449 = vrcp.pop %v1146
      %v1450 = vmul.f32 %v1146, %v1449
      %v1451 = vsub.f32 1.0, %v1450
      %v1452 = vmul.f32 %v1449, %v1451
      %v1453 = vadd.f32 %v1449, %v1452
      %vm1454 = vweird.f32 %v1146
      %vm1455 = vweird.f32 %v1449
      %vm1456 = vmor %vm1454, %vm1455
      %v1457 = vsel %vm1456, %v1449, %v1453
      %v1458 = vand.u32 2147483647, %v1146
      %vm1459 = vcmp.eq.f32.partialorder %v1458, 8.507059e+37
      %v1460 = vand.u32 %v1146, 2147483648
      %v1461 = vor.u32 1.1754944e-38, %v1460
      %v1462 = vsel %vm1459, %v1461, %v1457
      %v1463 = vmul.f32 1.0, %v1462
      %v1464 = vrcp.pop %v1149
      %v1465 = vmul.f32 %v1149, %v1464
      %v1466 = vsub.f32 1.0, %v1465
      %v1467 = vmul.f32 %v1464, %v1466
      %v1468 = vadd.f32 %v1464, %v1467
      %vm1469 = vweird.f32 %v1149
      %vm1470 = vweird.f32 %v1464
      %vm1471 = vmor %vm1469, %vm1470
      %v1472 = vsel %vm1471, %v1464, %v1468
      %v1473 = vand.u32 2147483647, %v1149
      %vm1474 = vcmp.eq.f32.partialorder %v1473, 8.507059e+37
      %v1475 = vand.u32 %v1149, 2147483648
      %v1476 = vor.u32 1.1754944e-38, %v1475
      %v1477 = vsel %vm1474, %v1476, %v1472
      %v1478 = vmul.f32 1.0, %v1477
      %v1479 = vrcp.pop %v1152
      %v1480 = vmul.f32 %v1152, %v1479
      %v1481 = vsub.f32 1.0, %v1480
      %v1482 = vmul.f32 %v1479, %v1481
      %v1483 = vadd.f32 %v1479, %v1482
      %vm1484 = vweird.f32 %v1152
      %vm1485 = vweird.f32 %v1479
      %vm1486 = vmor %vm1484, %vm1485
      %v1487 = vsel %vm1486, %v1479, %v1483
      %v1488 = vand.u32 2147483647, %v1152
      %vm1489 = vcmp.eq.f32.partialorder %v1488, 8.507059e+37
      %v1490 = vand.u32 %v1152, 2147483648
      %v1491 = vor.u32 1.1754944e-38, %v1490
      %v1492 = vsel %vm1489, %v1491, %v1487
      %v1493 = vmul.f32 1.0, %v1492
      %v1494 = vrcp.pop %v1155
      %v1495 = vmul.f32 %v1155, %v1494
      %v1496 = vsub.f32 1.0, %v1495
      %v1497 = vmul.f32 %v1494, %v1496
      %v1498 = vadd.f32 %v1494, %v1497
      %vm1499 = vweird.f32 %v1155
      %vm1500 = vweird.f32 %v1494
      %vm1501 = vmor %vm1499, %vm1500
      %v1502 = vsel %vm1501, %v1494, %v1498
      %v1503 = vand.u32 2147483647, %v1155
      %vm1504 = vcmp.eq.f32.partialorder %v1503, 8.507059e+37
      %v1505 = vand.u32 %v1155, 2147483648
      %v1506 = vor.u32 1.1754944e-38, %v1505
      %v1507 = vsel %vm1504, %v1506, %v1502
      %v1508 = vmul.f32 1.0, %v1507
      %v1509 = vrcp.pop %v1158
      %v1510 = vmul.f32 %v1158, %v1509
      %v1511 = vsub.f32 1.0, %v1510
      %v1512 = vmul.f32 %v1509, %v1511
      %v1513 = vadd.f32 %v1509, %v1512
      %vm1514 = vweird.f32 %v1158
      %vm1515 = vweird.f32 %v1509
      %vm1516 = vmor %vm1514, %vm1515
      %v1517 = vsel %vm1516, %v1509, %v1513
      %v1518 = vand.u32 2147483647, %v1158
      %vm1519 = vcmp.eq.f32.partialorder %v1518, 8.507059e+37
      %v1520 = vand.u32 %v1158, 2147483648
      %v1521 = vor.u32 1.1754944e-38, %v1520
      %v1522 = vsel %vm1519, %v1521, %v1517
      %v1523 = vmul.f32 1.0, %v1522
      %v1524 = vrcp.pop %v1161
      %v1525 = vmul.f32 %v1161, %v1524
      %v1526 = vsub.f32 1.0, %v1525
      %v1527 = vmul.f32 %v1524, %v1526
      %v1528 = vadd.f32 %v1524, %v1527
      %vm1529 = vweird.f32 %v1161
      %vm1530 = vweird.f32 %v1524
      %vm1531 = vmor %vm1529, %vm1530
      %v1532 = vsel %vm1531, %v1524, %v1528
      %v1533 = vand.u32 2147483647, %v1161
      %vm1534 = vcmp.eq.f32.partialorder %v1533, 8.507059e+37
      %v1535 = vand.u32 %v1161, 2147483648
      %v1536 = vor.u32 1.1754944e-38, %v1535
      %v1537 = vsel %vm1534, %v1536, %v1532
      %v1538 = vmul.f32 1.0, %v1537
      %v1539 = vrcp.pop %v1164
      %v1540 = vmul.f32 %v1164, %v1539
      %v1541 = vsub.f32 1.0, %v1540
      %v1542 = vmul.f32 %v1539, %v1541
      %v1543 = vadd.f32 %v1539, %v1542
      %vm1544 = vweird.f32 %v1164
      %vm1545 = vweird.f32 %v1539
      %vm1546 = vmor %vm1544, %vm1545
      %v1547 = vsel %vm1546, %v1539, %v1543
      %v1548 = vand.u32 2147483647, %v1164
      %vm1549 = vcmp.eq.f32.partialorder %v1548, 8.507059e+37
      %v1550 = vand.u32 %v1164, 2147483648
      %v1551 = vor.u32 1.1754944e-38, %v1550
      %v1552 = vsel %vm1549, %v1551, %v1547
      %v1553 = vmul.f32 1.0, %v1552
      %v1554 = vrcp.pop %v1167
      %v1555 = vmul.f32 %v1167, %v1554
      %v1556 = vsub.f32 1.0, %v1555
      %v1557 = vmul.f32 %v1554, %v1556
      %v1558 = vadd.f32 %v1554, %v1557
      %vm1559 = vweird.f32 %v1167
      %vm1560 = vweird.f32 %v1554
      %vm1561 = vmor %vm1559, %vm1560
      %v1562 = vsel %vm1561, %v1554, %v1558
      %v1563 = vand.u32 2147483647, %v1167
      %vm1564 = vcmp.eq.f32.partialorder %v1563, 8.507059e+37
      %v1565 = vand.u32 %v1167, 2147483648
      %v1566 = vor.u32 1.1754944e-38, %v1565
      %v1567 = vsel %vm1564, %v1566, %v1562
      %v1568 = vmul.f32 1.0, %v1567
      %v1569 = vrcp.pop %v1170
      %v1570 = vmul.f32 %v1170, %v1569
      %v1571 = vsub.f32 1.0, %v1570
      %v1572 = vmul.f32 %v1569, %v1571
      %v1573 = vadd.f32 %v1569, %v1572
      %vm1574 = vweird.f32 %v1170
      %vm1575 = vweird.f32 %v1569
      %vm1576 = vmor %vm1574, %vm1575
      %v1577 = vsel %vm1576, %v1569, %v1573
      %v1578 = vand.u32 2147483647, %v1170
      %vm1579 = vcmp.eq.f32.partialorder %v1578, 8.507059e+37
      %v1580 = vand.u32 %v1170, 2147483648
      %v1581 = vor.u32 1.1754944e-38, %v1580
      %v1582 = vsel %vm1579, %v1581, %v1577
      %v1583 = vmul.f32 1.0, %v1582
      %v1598 = vlaneseq
      %v1599 = vand.u32 %v1598, 127
      %v1600 = vperm.slane %v1388, %v1599
      %v1601 = vadd.s32 %v1599, 4294967288
      %v1602 = vperm.slane %v1403, %v1601
      %vm1603 = vcmask 130112
      %v1604 = vsel %vm1603, %v1602, %v1600
      %v1605 = vperm.slane %v1418, %v1599
      %v1606 = vperm.slane %v1433, %v1601
      %v1607 = vsel %vm1603, %v1606, %v1605
      %v1608 = vperm.slane %v1448, %v1599
      %v1609 = vperm.slane %v1463, %v1601
      %v1610 = vsel %vm1603, %v1609, %v1608
      %v1611 = vperm.slane %v1478, %v1599
      %v1612 = vperm.slane %v1493, %v1601
      %v1613 = vsel %vm1603, %v1612, %v1611
      %v1614 = vperm.slane %v1508, %v1599
      %v1615 = vperm.slane %v1523, %v1601
      %v1616 = vsel %vm1603, %v1615, %v1614
      %v1617 = vperm.slane %v1538, %v1599
      %v1618 = vperm.slane %v1553, %v1601
      %v1619 = vsel %vm1603, %v1618, %v1617
      %v1620 = vperm.slane %v1568, %v1599
      %v1621 = vperm.slane %v1583, %v1601
      %v1622 = vsel %vm1603, %v1621, %v1620
      %vm1623 = vcmask 1042434
      %v1624 = vsel %vm1623, %v1604, %v1604
      %vm1625 = vcmask 1043459
      %v1626 = vsel %vm1625, %v1604, %v1624
      %vm1627 = vcmask 1044484
      %v1628 = vsel %vm1627, %v1604, %v1626
      %vm1629 = vcmask 1045509
      %v1630 = vsel %vm1629, %v1604, %v1628
      %vm1631 = vcmask 1046534
      %v1632 = vsel %vm1631, %v1604, %v1630
      %vm1633 = vcmask 1047559
      %v1634 = vsel %vm1633, %v1604, %v1632
      %v1635 = vsel %vm1623, %v1607, %v1607
      %v1636 = vsel %vm1625, %v1607, %v1635
      %v1637 = vsel %vm1627, %v1607, %v1636
      %v1638 = vsel %vm1629, %v1607, %v1637
      %v1639 = vsel %vm1631, %v1607, %v1638
      %v1640 = vsel %vm1633, %v1607, %v1639
      %v1641 = vsel %vm1623, %v1610, %v1610
      %v1642 = vsel %vm1625, %v1610, %v1641
      %v1643 = vsel %vm1627, %v1610, %v1642
      %v1644 = vsel %vm1629, %v1610, %v1643
      %v1645 = vsel %vm1631, %v1610, %v1644
      %v1646 = vsel %vm1633, %v1610, %v1645
      %v1647 = vsel %vm1623, %v1613, %v1613
      %v1648 = vsel %vm1625, %v1613, %v1647
      %v1649 = vsel %vm1627, %v1613, %v1648
      %v1650 = vsel %vm1629, %v1613, %v1649
      %v1651 = vsel %vm1631, %v1613, %v1650
      %v1652 = vsel %vm1633, %v1613, %v1651
      %v1653 = vsel %vm1623, %v1616, %v1616
      %v1654 = vsel %vm1625, %v1616, %v1653
      %v1655 = vsel %vm1627, %v1616, %v1654
      %v1656 = vsel %vm1629, %v1616, %v1655
      %v1657 = vsel %vm1631, %v1616, %v1656
      %v1658 = vsel %vm1633, %v1616, %v1657
      %v1659 = vsel %vm1623, %v1619, %v1619
      %v1660 = vsel %vm1625, %v1619, %v1659
      %v1661 = vsel %vm1627, %v1619, %v1660
      %v1662 = vsel %vm1629, %v1619, %v1661
      %v1663 = vsel %vm1631, %v1619, %v1662
      %v1664 = vsel %vm1633, %v1619, %v1663
      %v1665 = vsel %vm1623, %v1622, %v1622
      %v1666 = vsel %vm1625, %v1622, %v1665
      %v1667 = vsel %vm1627, %v1622, %v1666
      %v1668 = vsel %vm1629, %v1622, %v1667
      %v1669 = vsel %vm1631, %v1622, %v1668
      %v1670 = vsel %vm1633, %v1622, %v1669
      %v1678 = vmul.f32 %v1198, %v1634
      %v1679 = vmul.f32 %v1227, %v1640
      %v1680 = vmul.f32 %v1256, %v1646
      %v1681 = vmul.f32 %v1285, %v1652
      %v1682 = vmul.f32 %v1314, %v1658
      %v1683 = vmul.f32 %v1343, %v1664
      %v1684 = vmul.f32 %v1372, %v1670
      %v1685 = vld [vmem:[%s3] sm:$0xff]
      %v1686 = vld [vmem:[%s3 + $0x8] sm:$0xff]
      %v1687 = vld [vmem:[%s3 + $0x10] sm:$0xff]
      %v1688 = vld [vmem:[%s3 + $0x18] sm:$0xff]
      %v1689 = vld [vmem:[%s4 + $0xa8] sm:$0xff]
      %v1690 = vld [vmem:[%s4 + $0xb0] sm:$0xff]
      %v1691 = vld [vmem:[%s4 + $0xb8] sm:$0xff]
      %v1692 = vld [vmem:[%s4 + $0xc0] sm:$0xff]
      %1694 = vset.pattern.permute.xlu0 0
      %1695 = vperm.xlu0 %1694, %v1689
      %v1696 = vpop.permute.xlu0 %1695
      %1699 = vset.pattern.permute.xlu0 0
      %1700 = vperm.xlu0 %1699, %v1690
      %v1701 = vpop.permute.xlu0 %1700
      %1704 = vset.pattern.permute.xlu0 0
      %1705 = vperm.xlu0 %1704, %v1691
      %v1706 = vpop.permute.xlu0 %1705
      %1709 = vset.pattern.permute.xlu0 0
      %1710 = vperm.xlu0 %1709, %v1692
      %v1711 = vpop.permute.xlu0 %1710
      %vm1713 = vcmask 457728
      %v1715 = vsel %vm1713, %v1685, 0
      %v1718 = vsel %vm1713, %v1686, 0
      %v1721 = vsel %vm1713, %v1687, 0
      %v1724 = vsel %vm1713, %v1688, 0
      %1726 = vmatpush.msra.mxu0 0.0
      %1727 = vmatpush.msra.mxu0 0.0
      %1728 = vmatpush.msra.mxu0 0.0
      %1729 = vmatpush.msra.mxu0 0.0
      %1730 = vmatpush.msra.mxu0 0.0
      %1731 = vmatpush.msra.mxu0 0.0
      %1732 = vmatpush.msra.mxu0 0.0
      %1733 = vmatpush.msra.mxu0 0.0
      %1734 = vmatpush.msra.mxu0 0.0
      %1735 = vmatpush.msra.mxu0 %v1684
      %1736 = vmatpush.msra.mxu0 %v1683
      %1737 = vmatpush.msra.mxu0 %v1682
      %1738 = vmatpush.msra.mxu0 %v1681
      %1739 = vmatpush.msra.mxu0 %v1680
      %1740 = vmatpush.msra.mxu0 %v1679
      %1741 = vmatpush.msra.mxu0 %v1678
      %1742 = vmatmul.f32.gmra.mxu0 %v1715
      %v1743 = vpop.f32.mrf.mxu0
      %v1744 = vadd.f32 %v1696, %v1743
      %1745 = vmatmul.f32.gmra.mxu0 %v1718
      %v1746 = vpop.f32.mrf.mxu0
      %v1747 = vadd.f32 %v1701, %v1746
      %1748 = vmatmul.f32.gmra.mxu0 %v1721
      %v1749 = vpop.f32.mrf.mxu0
      %v1750 = vadd.f32 %v1706, %v1749
      %1751 = vmatmul.f32.gmra.mxu0 %v1724
      %v1752 = vpop.f32.mrf.mxu0
      %v1753 = vadd.f32 %v1711, %v1752
      %1754 = vdwg.mxu0
      %v1755 = vmax.f32 %v1744, 0.0
      %v1756 = vmax.f32 %v1747, 0.0
      %v1757 = vmax.f32 %v1750, 0.0
      %v1758 = vmax.f32 %v1753, 0.0
      %1759 = vst.msk [vmem:[%s244] sm:$0xff] %vm1044, %v1755
      %1760 = vst.msk [vmem:[%s244 + $0x8] sm:$0xff] %vm1044, %v1756
      %1761 = vst.msk [vmem:[%s244 + $0x10] sm:$0xff] %vm1044, %v1757
      %1762 = vst.msk [vmem:[%s244 + $0x18] sm:$0xff] %vm1044, %v1758
      %p1763 = scmp.lt.s32.totalorder %s20, 1
      %s1764 = scalar_select %p1763, %s20, 1
      %p1765 = scmp.lt.s32.totalorder %s21, 0
      %s1766 = scalar_select %p1765, %s21, 0
      %s1767 = smul.addr %s1764, 4
      %s1768 = sadd.s32 %s1766, %s1767
      %s1769 = smul.addr %s1768, 8
      %s1770 = scalar_lea.vmem %s5, %s1769
      // Predicated region
      $region45: #{tpu_custom_call.1} parent=39 // pred_check
        %p1771 = pneg %p158
      $region46: #{tpu_custom_call.1} parent=39 // pred_check_branch
        %1773 = sbr.rel (%p1771) target = $region48
      $region47: #{tpu_custom_call.1} parent=39 // pred_region
        _
      $region48: #{tpu_custom_call.1} parent=39 // pred_fallthru
        _
    $region40: #{tpu_custom_call.1} parent=5 // pred_fallthru
      _
    %p1774 = scmp.le.s32.totalorder 2, %s11
    // Predicated region
    $region49: #{tpu_custom_call.1} parent=5 // pred_check
      %p1775 = pneg %p1774
    $region50: #{tpu_custom_call.1} parent=5 // pred_check_branch
      %1777 = sbr.rel (%p1775) target = $region52
    $region51: #{tpu_custom_call.1} parent=5 // pred_region
      %s1778 = ssub.s32 %s11, 2
      // Predicated region
      $region53: #{tpu_custom_call.1} parent=51 // pred_check
        %p1779 = pneg %p164
      $region54: #{tpu_custom_call.1} parent=51 // pred_check_branch
        %1781 = sbr.rel (%p1779) target = $region56
      $region55: #{tpu_custom_call.1} parent=51 // pred_region
        %p1782 = scmp.lt.s32.totalorder %s22, 1
        %s1783 = scalar_select %p1782, %s22, 1
        %p1784 = scmp.lt.s32.totalorder %s23, 0
        %s1785 = scalar_select %p1784, %s23, 0
        %s1786 = smul.addr %s1783, 4
        %s1787 = sadd.s32 %s1785, %s1786
        %s1788 = smul.addr %s1787, 8
        %s1789 = scalar_lea.vmem %s5, %s1788
      $region56: #{tpu_custom_call.1} parent=51 // pred_fallthru
        _
    $region52: #{tpu_custom_call.1} parent=5 // pred_fallthru
      _
  $region6: #{tpu_custom_call.1} parent=0 // loop_footer
    %s15 = sadd.s32 1, %s11
  $region7: #{tpu_custom_call.1} parent=0 // loop_footer_branch
    %10 = sbr.rel target = $region3
  $region8: #{tpu_custom_call.1} parent=0 // loop_exit
    _

</llo_original>
